<compile_context>
chip_gen: v7x
topology: tpu7x:2x2x1
jax: 0.10.0
libtpu: 0.0.40
codegen_flags: <defaults>
</compile_context>

<pallas_src>
import jax
import jax.numpy as jnp
from jax.experimental import pallas as pl
from jax.experimental.pallas import tpu as pltpu

SELU_ALPHA = 1.6732632423543772
SELU_SCALE = 1.0507009873554805


def _selu(x):
    # exp(min(x,0)) keeps the discarded positive lane finite (no spurious inf/overflow).
    neg = SELU_ALPHA * jnp.exp(jnp.minimum(x, 0.0)) - SELU_ALPHA
    return SELU_SCALE * jnp.where(x >= 0.0, x, neg)


def autoencoder_kernel(x_ref,
                       w1, b1, w2, b2, w3, b3,    # encoder (row-packed, bf16 weights)
                       w4, b4, w5, b5, w6, b6,    # decoder (row-packed, bf16 weights)
                       o_ref):
    # bf16 MXU operands (weights already bf16), f32 accumulation, bias + SELU in f32.
    def lin(h, w_ref, b_ref):
        acc = jnp.dot(h.astype(jnp.bfloat16), w_ref[...],
                      preferred_element_type=jnp.float32)
        return acc + b_ref[...]

    h = x_ref[...]                       # (tile_r, 8*c_in) f32, lane-dense

    # encoder: (Linear+SELU) x2, then plain Linear bottleneck
    h = _selu(lin(h, w1, b1))
    h = _selu(lin(h, w2, b2))
    h = lin(h, w3, b3)

    # decoder: (Linear+SELU) x3 ; trailing nn.Tanh skipped by the reference forward()
    h = _selu(lin(h, w4, b4))
    h = _selu(lin(h, w5, b5))
    h = _selu(lin(h, w6, b6))

    o_ref[...] = h


def _round_up(n, m):
    return (n + m - 1) // m * m


def _choose_tile_rows(n_rows):
    # Aim for >=4 grid steps (v7x: 2 TCs x double-buffering headroom) while capping the
    # tile at 1024 packed rows (8192 logical rows): double-buffered x/out tiles plus the
    # widest live (tile, 8*enc_out) f32 intermediates stay well under v7x's 64 MiB VMEM.
    target = pl.cdiv(n_rows, 4)
    return max(8, min(1024, _round_up(target, 8)))


def pack_params(params):
    """One-time preprocessing (call outside the jitted forward):
    W(ni,nf) -> kron(I_8, W) in bf16 (block-diagonal row-packing), bias -> tile x8 in f32.
    A packed activation row [x_0 | x_1 | ... | x_7] @ kron(I_8, W) = [x_0@W | ... | x_7@W]."""
    eye8 = jnp.eye(8, dtype=jnp.float32)
    packed = []
    for l in range(6):
        w, b = params[2 * l], params[2 * l + 1]
        packed.append(jnp.kron(eye8, w).astype(jnp.bfloat16))
        packed.append(jnp.tile(b.astype(jnp.float32), (1, 8)))
    return packed


@jax.jit
def autoencoder_forward(x, *packed_params):
    batch, c_in = x.shape

    pad = (-batch) % 8
    if pad:
        # Tiny (<8 rows) pad only when batch is not a multiple of 8; the common
        # multiple-of-8 case takes the copy-free reshape path below.
        x = jnp.pad(x, ((0, pad), (0, 0)))
    rows = (batch + pad) // 8
    width = 8 * c_in                       # lane-dense packed width (=128 for c_in=16)

    xp = x.reshape(rows, width)            # row-major contiguous -> free view

    tile_r = _choose_tile_rows(rows)
    grid = (pl.cdiv(rows, tile_r),)        # ragged last block handled/masked by Pallas

    # Weights/biases: full-array blocks with constant index maps -> VMEM-resident
    # across all grid steps (no re-DMA per step).
    weight_specs = [pl.BlockSpec(p.shape, lambda i: (0, 0)) for p in packed_params]

    # Advisory cost hint (logical flops; packed bf16 weight bytes; padded-row I/O).
    layer_dims = [(packed_params[2 * l].shape[0] // 8, packed_params[2 * l].shape[1] // 8)
                  for l in range(6)]
    flops = 2 * batch * sum(ni * nf for ni, nf in layer_dims)
    transcendentals = batch * sum(layer_dims[i][1] for i in (0, 1, 3, 4, 5))  # SELU layers
    bytes_accessed = (2 * rows * width * 4
                      + sum(int(p.size) * p.dtype.itemsize for p in packed_params))

    out = pl.pallas_call(
        autoencoder_kernel,
        out_shape=jax.ShapeDtypeStruct((rows, width), jnp.float32),
        grid=grid,
        in_specs=[pl.BlockSpec((tile_r, width), lambda i: (i, 0))] + weight_specs,
        out_specs=pl.BlockSpec((tile_r, width), lambda i: (i, 0)),
        compiler_params=pltpu.CompilerParams(
            dimension_semantics=("parallel",),
            vmem_limit_bytes=48 * 1024 * 1024),
        cost_estimate=pl.CostEstimate(
            flops=flops,
            transcendentals=transcendentals,
            bytes_accessed=bytes_accessed),
    )(xp, *packed_params)

    out = out.reshape(batch + pad, c_in)
    return out[:batch] if pad else out


def init_linear(key, n_in, n_out):
    # Deterministic init mimicking PyTorch Linear default: U(-1/sqrt(n_in), 1/sqrt(n_in)).
    kw, kb = jax.random.split(key)
    bound = 1.0 / jnp.sqrt(jnp.float32(n_in))
    w = jax.random.uniform(kw, (n_in, n_out), jnp.float32, -bound, bound)
    b = jax.random.uniform(kb, (1, n_out), jnp.float32, -bound, bound)
    return w, b


def make_autoencoder_params(key, c_in, nfs, encoder_type="over"):
    if encoder_type == "over":
        enc_out = int(c_in * 8)
    elif encoder_type == "under":
        enc_out = int(c_in // 1.5)
    else:
        raise ValueError(encoder_type)

    enc_dims = [c_in] + list(nfs)                       # e.g. [C, N1, N2]
    dec_dims = list(reversed(enc_dims + [enc_out]))     # e.g. [enc_out, N2, N1, C]

    params = []
    keys = jax.random.split(key, len(enc_dims) + len(dec_dims) - 1)
    k = 0
    for i in range(len(enc_dims) - 1):
        params.extend(init_linear(keys[k], enc_dims[i], enc_dims[i + 1])); k += 1
    params.extend(init_linear(keys[k], enc_dims[-1], enc_out)); k += 1
    for i in range(len(dec_dims) - 1):
        params.extend(init_linear(keys[k], dec_dims[i], dec_dims[i + 1])); k += 1
    return params, enc_out


def reference_forward_f32(x, params):
    """Pure-JAX f32 reference of the PyTorch forward (eval mode)."""
    w1, b1, w2, b2, w3, b3, w4, b4, w5, b5, w6, b6 = params
    h = x
    h = _selu(h @ w1 + b1)
    h = _selu(h @ w2 + b2)
    h = h @ w3 + b3
    h = _selu(h @ w4 + b4)
    h = _selu(h @ w5 + b5)
    h = _selu(h @ w6 + b6)
    return h


def reference_forward_bf16(x, params):
    """Mirrors the kernel numerics: bf16 dot operands, f32 accumulation/bias/SELU."""
    def lin(h, w, b):
        return jnp.dot(h.astype(jnp.bfloat16), w.astype(jnp.bfloat16),
                       preferred_element_type=jnp.float32) + b
    w1, b1, w2, b2, w3, b3, w4, b4, w5, b5, w6, b6 = params
    h = x.astype(jnp.float32)
    h = _selu(lin(h, w1, b1))
    h = _selu(lin(h, w2, b2))
    h = lin(h, w3, b3)
    h = _selu(lin(h, w4, b4))
    h = _selu(lin(h, w5, b5))
    h = _selu(lin(h, w6, b6))
    return h


if __name__ == "__main__":
    key = jax.random.PRNGKey(0)
    kx, kx2, kp = jax.random.split(key, 3)

    # Shapes consistent with AutoEncoder(nfs=[32, 24], c_in=16, encoder_type='over',
    # ps=0.1, act='selu').
    c_in = 16
    nfs = [32, 24]
    params, enc_out = make_autoencoder_params(kp, c_in, nfs, encoder_type="over")
    packed_params = pack_params(params)     # one-time block-diagonal + bf16 packing

    # Small test (single grid step).
    batch = 8
    x = jax.random.normal(kx, (batch, c_in), jnp.float32)
    out = autoencoder_forward(x, *packed_params)
    jax.block_until_ready(out)

    ref_bf16 = reference_forward_bf16(x, params)
    ref_f32 = reference_forward_f32(x, params)
    assert out.shape == (batch, c_in), out.shape
    err_bf16 = float(jnp.max(jnp.abs(out - ref_bf16)))
    err_f32 = float(jnp.max(jnp.abs(out - ref_f32)))
    assert jnp.allclose(out, ref_bf16, atol=5e-3, rtol=5e-3), err_bf16
    assert jnp.allclose(out, ref_f32, atol=5e-2, rtol=5e-2), err_f32

    # Larger batch: exercises a multi-step grid (4 steps) with a ragged, masked last
    # block (250 packed rows, tile of 64) -- no wrapper pad/slice on this path.
    batch2 = 2000
    x2 = jax.random.normal(kx2, (batch2, c_in), jnp.float32)
    out2 = autoencoder_forward(x2, *packed_params)
    jax.block_until_ready(out2)
    ref2 = reference_forward_bf16(x2, params)
    assert out2.shape == (batch2, c_in), out2.shape
    assert jnp.allclose(out2, ref2, atol=5e-3, rtol=5e-3), float(jnp.max(jnp.abs(out2 - ref2)))

    print("KERNEL_OK")
</pallas_src>

<mosaic_0001>
module attributes {stable_mosaic.version = 11 : i64} {
  func.func @autoencoder_kernel(%arg0: i32, %arg1: memref<8x128xf32, #tpu.memory_space<vmem>>, %arg2: memref<128x256xbf16, #tpu.memory_space<vmem>>, %arg3: memref<1x256xf32, #tpu.memory_space<vmem>>, %arg4: memref<256x192xbf16, #tpu.memory_space<vmem>>, %arg5: memref<1x192xf32, #tpu.memory_space<vmem>>, %arg6: memref<192x1024xbf16, #tpu.memory_space<vmem>>, %arg7: memref<1x1024xf32, #tpu.memory_space<vmem>>, %arg8: memref<1024x192xbf16, #tpu.memory_space<vmem>>, %arg9: memref<1x192xf32, #tpu.memory_space<vmem>>, %arg10: memref<192x256xbf16, #tpu.memory_space<vmem>>, %arg11: memref<1x256xf32, #tpu.memory_space<vmem>>, %arg12: memref<256x128xbf16, #tpu.memory_space<vmem>>, %arg13: memref<1x128xf32, #tpu.memory_space<vmem>>, %arg14: memref<8x128xf32, #tpu.memory_space<vmem>>) attributes {dimension_semantics = [#tpu.dimension_semantics<parallel>], iteration_bounds = array<i64: 1>, scalar_prefetch = 0 : i64, scratch_operands = 0 : i64, tpu.core_type = #tpu.core_type<tc>, window_params = [{transform_indices = @transform_0, window_bounds = array<i64: 8, 128>}, {pipeline_mode = #tpu.pipeline_mode<synchronous>, transform_indices = @transform_1, window_bounds = array<i64: 128, 256>}, {pipeline_mode = #tpu.pipeline_mode<synchronous>, transform_indices = @transform_2, window_bounds = array<i64: 1, 256>}, {pipeline_mode = #tpu.pipeline_mode<synchronous>, transform_indices = @transform_3, window_bounds = array<i64: 256, 192>}, {pipeline_mode = #tpu.pipeline_mode<synchronous>, transform_indices = @transform_4, window_bounds = array<i64: 1, 192>}, {pipeline_mode = #tpu.pipeline_mode<synchronous>, transform_indices = @transform_5, window_bounds = array<i64: 192, 1024>}, {pipeline_mode = #tpu.pipeline_mode<synchronous>, transform_indices = @transform_6, window_bounds = array<i64: 1, 1024>}, {pipeline_mode = #tpu.pipeline_mode<synchronous>, transform_indices = @transform_7, window_bounds = array<i64: 1024, 192>}, {pipeline_mode = #tpu.pipeline_mode<synchronous>, transform_indices = @transform_8, window_bounds = array<i64: 1, 192>}, {pipeline_mode = #tpu.pipeline_mode<synchronous>, transform_indices = @transform_9, window_bounds = array<i64: 192, 256>}, {pipeline_mode = #tpu.pipeline_mode<synchronous>, transform_indices = @transform_10, window_bounds = array<i64: 1, 256>}, {pipeline_mode = #tpu.pipeline_mode<synchronous>, transform_indices = @transform_11, window_bounds = array<i64: 256, 128>}, {pipeline_mode = #tpu.pipeline_mode<synchronous>, transform_indices = @transform_12, window_bounds = array<i64: 1, 128>}, {transform_indices = @transform_13, window_bounds = array<i64: 8, 128>}]} {
    %c0 = arith.constant 0 : index
    %c0_0 = arith.constant 0 : index
    %0 = vector.load %arg1[%c0, %c0_0] : memref<8x128xf32, #tpu.memory_space<vmem>>, vector<8x128xf32>
    %1 = arith.truncf %0 : vector<8x128xf32> to vector<8x128xbf16>
    %c0_1 = arith.constant 0 : index
    %c0_2 = arith.constant 0 : index
    %2 = vector.load %arg2[%c0_1, %c0_2] : memref<128x256xbf16, #tpu.memory_space<vmem>>, vector<128x256xbf16>
    %cst = arith.constant dense<0.000000e+00> : vector<8x256xf32>
    %3 = tpu.matmul %1, %2, %cst {dimension_numbers = #tpu.dot_dimension_numbers<[1], [0], [0], [1], [0, 0, 1, 1], [], []>} : vector<8x128xbf16>, vector<128x256xbf16>, vector<8x256xf32> -> vector<8x256xf32>
    %c0_3 = arith.constant 0 : index
    %c0_4 = arith.constant 0 : index
    %4 = vector.load %arg3[%c0_3, %c0_4] : memref<1x256xf32, #tpu.memory_space<vmem>>, vector<1x256xf32>
    %5 = vector.broadcast %4 : vector<1x256xf32> to vector<8x256xf32>
    %6 = arith.addf %3, %5 : vector<8x256xf32>
    %cst_5 = arith.constant 0.000000e+00 : f32
    %7 = vector.broadcast %cst_5 : f32 to vector<8x256xf32>
    %8 = arith.minimumf %6, %7 : vector<8x256xf32>
    %9 = math.exp %8 : vector<8x256xf32>
    %cst_6 = arith.constant 1.67326319 : f32
    %10 = vector.broadcast %cst_6 : f32 to vector<8x256xf32>
    %11 = arith.mulf %10, %9 : vector<8x256xf32>
    %cst_7 = arith.constant 1.67326319 : f32
    %12 = vector.broadcast %cst_7 : f32 to vector<8x256xf32>
    %13 = arith.subf %11, %12 : vector<8x256xf32>
    %cst_8 = arith.constant 0.000000e+00 : f32
    %14 = vector.broadcast %cst_8 : f32 to vector<8x256xf32>
    %15 = arith.cmpf oge, %6, %14 : vector<8x256xf32>
    %16 = arith.select %15, %6, %13 : vector<8x256xi1>, vector<8x256xf32>
    %cst_9 = arith.constant 1.05070102 : f32
    %17 = vector.broadcast %cst_9 : f32 to vector<8x256xf32>
    %18 = arith.mulf %17, %16 : vector<8x256xf32>
    %19 = arith.truncf %18 : vector<8x256xf32> to vector<8x256xbf16>
    %c0_10 = arith.constant 0 : index
    %c0_11 = arith.constant 0 : index
    %20 = vector.load %arg4[%c0_10, %c0_11] : memref<256x192xbf16, #tpu.memory_space<vmem>>, vector<256x192xbf16>
    %cst_12 = arith.constant dense<0.000000e+00> : vector<8x192xf32>
    %21 = tpu.matmul %19, %20, %cst_12 {dimension_numbers = #tpu.dot_dimension_numbers<[1], [0], [0], [1], [0, 0, 1, 1], [], []>} : vector<8x256xbf16>, vector<256x192xbf16>, vector<8x192xf32> -> vector<8x192xf32>
    %c0_13 = arith.constant 0 : index
    %c0_14 = arith.constant 0 : index
    %22 = vector.load %arg5[%c0_13, %c0_14] : memref<1x192xf32, #tpu.memory_space<vmem>>, vector<1x192xf32>
    %23 = vector.broadcast %22 : vector<1x192xf32> to vector<8x192xf32>
    %24 = arith.addf %21, %23 : vector<8x192xf32>
    %cst_15 = arith.constant 0.000000e+00 : f32
    %25 = vector.broadcast %cst_15 : f32 to vector<8x192xf32>
    %26 = arith.minimumf %24, %25 : vector<8x192xf32>
    %27 = math.exp %26 : vector<8x192xf32>
    %cst_16 = arith.constant 1.67326319 : f32
    %28 = vector.broadcast %cst_16 : f32 to vector<8x192xf32>
    %29 = arith.mulf %28, %27 : vector<8x192xf32>
    %cst_17 = arith.constant 1.67326319 : f32
    %30 = vector.broadcast %cst_17 : f32 to vector<8x192xf32>
    %31 = arith.subf %29, %30 : vector<8x192xf32>
    %cst_18 = arith.constant 0.000000e+00 : f32
    %32 = vector.broadcast %cst_18 : f32 to vector<8x192xf32>
    %33 = arith.cmpf oge, %24, %32 : vector<8x192xf32>
    %34 = arith.select %33, %24, %31 : vector<8x192xi1>, vector<8x192xf32>
    %cst_19 = arith.constant 1.05070102 : f32
    %35 = vector.broadcast %cst_19 : f32 to vector<8x192xf32>
    %36 = arith.mulf %35, %34 : vector<8x192xf32>
    %37 = arith.truncf %36 : vector<8x192xf32> to vector<8x192xbf16>
    %c0_20 = arith.constant 0 : index
    %c0_21 = arith.constant 0 : index
    %38 = vector.load %arg6[%c0_20, %c0_21] : memref<192x1024xbf16, #tpu.memory_space<vmem>>, vector<192x1024xbf16>
    %cst_22 = arith.constant dense<0.000000e+00> : vector<8x1024xf32>
    %39 = tpu.matmul %37, %38, %cst_22 {dimension_numbers = #tpu.dot_dimension_numbers<[1], [0], [0], [1], [0, 0, 1, 1], [], []>} : vector<8x192xbf16>, vector<192x1024xbf16>, vector<8x1024xf32> -> vector<8x1024xf32>
    %c0_23 = arith.constant 0 : index
    %c0_24 = arith.constant 0 : index
    %40 = vector.load %arg7[%c0_23, %c0_24] : memref<1x1024xf32, #tpu.memory_space<vmem>>, vector<1x1024xf32>
    %41 = vector.broadcast %40 : vector<1x1024xf32> to vector<8x1024xf32>
    %42 = arith.addf %39, %41 : vector<8x1024xf32>
    %43 = arith.truncf %42 : vector<8x1024xf32> to vector<8x1024xbf16>
    %c0_25 = arith.constant 0 : index
    %c0_26 = arith.constant 0 : index
    %44 = vector.load %arg8[%c0_25, %c0_26] : memref<1024x192xbf16, #tpu.memory_space<vmem>>, vector<1024x192xbf16>
    %cst_27 = arith.constant dense<0.000000e+00> : vector<8x192xf32>
    %45 = tpu.matmul %43, %44, %cst_27 {dimension_numbers = #tpu.dot_dimension_numbers<[1], [0], [0], [1], [0, 0, 1, 1], [], []>} : vector<8x1024xbf16>, vector<1024x192xbf16>, vector<8x192xf32> -> vector<8x192xf32>
    %c0_28 = arith.constant 0 : index
    %c0_29 = arith.constant 0 : index
    %46 = vector.load %arg9[%c0_28, %c0_29] : memref<1x192xf32, #tpu.memory_space<vmem>>, vector<1x192xf32>
    %47 = vector.broadcast %46 : vector<1x192xf32> to vector<8x192xf32>
    %48 = arith.addf %45, %47 : vector<8x192xf32>
    %cst_30 = arith.constant 0.000000e+00 : f32
    %49 = vector.broadcast %cst_30 : f32 to vector<8x192xf32>
    %50 = arith.minimumf %48, %49 : vector<8x192xf32>
    %51 = math.exp %50 : vector<8x192xf32>
    %cst_31 = arith.constant 1.67326319 : f32
    %52 = vector.broadcast %cst_31 : f32 to vector<8x192xf32>
    %53 = arith.mulf %52, %51 : vector<8x192xf32>
    %cst_32 = arith.constant 1.67326319 : f32
    %54 = vector.broadcast %cst_32 : f32 to vector<8x192xf32>
    %55 = arith.subf %53, %54 : vector<8x192xf32>
    %cst_33 = arith.constant 0.000000e+00 : f32
    %56 = vector.broadcast %cst_33 : f32 to vector<8x192xf32>
    %57 = arith.cmpf oge, %48, %56 : vector<8x192xf32>
    %58 = arith.select %57, %48, %55 : vector<8x192xi1>, vector<8x192xf32>
    %cst_34 = arith.constant 1.05070102 : f32
    %59 = vector.broadcast %cst_34 : f32 to vector<8x192xf32>
    %60 = arith.mulf %59, %58 : vector<8x192xf32>
    %61 = arith.truncf %60 : vector<8x192xf32> to vector<8x192xbf16>
    %c0_35 = arith.constant 0 : index
    %c0_36 = arith.constant 0 : index
    %62 = vector.load %arg10[%c0_35, %c0_36] : memref<192x256xbf16, #tpu.memory_space<vmem>>, vector<192x256xbf16>
    %cst_37 = arith.constant dense<0.000000e+00> : vector<8x256xf32>
    %63 = tpu.matmul %61, %62, %cst_37 {dimension_numbers = #tpu.dot_dimension_numbers<[1], [0], [0], [1], [0, 0, 1, 1], [], []>} : vector<8x192xbf16>, vector<192x256xbf16>, vector<8x256xf32> -> vector<8x256xf32>
    %c0_38 = arith.constant 0 : index
    %c0_39 = arith.constant 0 : index
    %64 = vector.load %arg11[%c0_38, %c0_39] : memref<1x256xf32, #tpu.memory_space<vmem>>, vector<1x256xf32>
    %65 = vector.broadcast %64 : vector<1x256xf32> to vector<8x256xf32>
    %66 = arith.addf %63, %65 : vector<8x256xf32>
    %cst_40 = arith.constant 0.000000e+00 : f32
    %67 = vector.broadcast %cst_40 : f32 to vector<8x256xf32>
    %68 = arith.minimumf %66, %67 : vector<8x256xf32>
    %69 = math.exp %68 : vector<8x256xf32>
    %cst_41 = arith.constant 1.67326319 : f32
    %70 = vector.broadcast %cst_41 : f32 to vector<8x256xf32>
    %71 = arith.mulf %70, %69 : vector<8x256xf32>
    %cst_42 = arith.constant 1.67326319 : f32
    %72 = vector.broadcast %cst_42 : f32 to vector<8x256xf32>
    %73 = arith.subf %71, %72 : vector<8x256xf32>
    %cst_43 = arith.constant 0.000000e+00 : f32
    %74 = vector.broadcast %cst_43 : f32 to vector<8x256xf32>
    %75 = arith.cmpf oge, %66, %74 : vector<8x256xf32>
    %76 = arith.select %75, %66, %73 : vector<8x256xi1>, vector<8x256xf32>
    %cst_44 = arith.constant 1.05070102 : f32
    %77 = vector.broadcast %cst_44 : f32 to vector<8x256xf32>
    %78 = arith.mulf %77, %76 : vector<8x256xf32>
    %79 = arith.truncf %78 : vector<8x256xf32> to vector<8x256xbf16>
    %c0_45 = arith.constant 0 : index
    %c0_46 = arith.constant 0 : index
    %80 = vector.load %arg12[%c0_45, %c0_46] : memref<256x128xbf16, #tpu.memory_space<vmem>>, vector<256x128xbf16>
    %cst_47 = arith.constant dense<0.000000e+00> : vector<8x128xf32>
    %81 = tpu.matmul %79, %80, %cst_47 {dimension_numbers = #tpu.dot_dimension_numbers<[1], [0], [0], [1], [0, 0, 1, 1], [], []>} : vector<8x256xbf16>, vector<256x128xbf16>, vector<8x128xf32> -> vector<8x128xf32>
    %c0_48 = arith.constant 0 : index
    %c0_49 = arith.constant 0 : index
    %82 = vector.load %arg13[%c0_48, %c0_49] : memref<1x128xf32, #tpu.memory_space<vmem>>, vector<1x128xf32>
    %83 = vector.broadcast %82 : vector<1x128xf32> to vector<8x128xf32>
    %84 = arith.addf %81, %83 : vector<8x128xf32>
    %cst_50 = arith.constant 0.000000e+00 : f32
    %85 = vector.broadcast %cst_50 : f32 to vector<8x128xf32>
    %86 = arith.minimumf %84, %85 : vector<8x128xf32>
    %87 = math.exp %86 : vector<8x128xf32>
    %cst_51 = arith.constant 1.67326319 : f32
    %88 = vector.broadcast %cst_51 : f32 to vector<8x128xf32>
    %89 = arith.mulf %88, %87 : vector<8x128xf32>
    %cst_52 = arith.constant 1.67326319 : f32
    %90 = vector.broadcast %cst_52 : f32 to vector<8x128xf32>
    %91 = arith.subf %89, %90 : vector<8x128xf32>
    %cst_53 = arith.constant 0.000000e+00 : f32
    %92 = vector.broadcast %cst_53 : f32 to vector<8x128xf32>
    %93 = arith.cmpf oge, %84, %92 : vector<8x128xf32>
    %94 = arith.select %93, %84, %91 : vector<8x128xi1>, vector<8x128xf32>
    %cst_54 = arith.constant 1.05070102 : f32
    %95 = vector.broadcast %cst_54 : f32 to vector<8x128xf32>
    %96 = arith.mulf %95, %94 : vector<8x128xf32>
    %c0_55 = arith.constant 0 : index
    %c0_56 = arith.constant 0 : index
    %97 = vector.load %arg14[%c0_55, %c0_56] : memref<8x128xf32, #tpu.memory_space<vmem>>, vector<8x128xf32>
    tpu.vector_store %arg14[%c0_55, %c0_56], %96 {strides = array<i32>} : memref<8x128xf32, #tpu.memory_space<vmem>>, vector<8x128xf32>,
    return
  }
  func.func @transform_0(%arg0: i32) -> (i32, i32) {
    %c0_i32 = arith.constant 0 : i32
    %c0_i32_0 = arith.constant 0 : i32
    return %arg0, %c0_i32 : i32, i32
  }
  func.func @transform_1(%arg0: i32) -> (i32, i32) {
    %c0_i32 = arith.constant 0 : i32
    %c0_i32_0 = arith.constant 0 : i32
    %c0_i32_1 = arith.constant 0 : i32
    return %c0_i32, %c0_i32_0 : i32, i32
  }
  func.func @transform_2(%arg0: i32) -> (i32, i32) {
    %c0_i32 = arith.constant 0 : i32
    %c0_i32_0 = arith.constant 0 : i32
    %c0_i32_1 = arith.constant 0 : i32
    return %c0_i32, %c0_i32_0 : i32, i32
  }
  func.func @transform_3(%arg0: i32) -> (i32, i32) {
    %c0_i32 = arith.constant 0 : i32
    %c0_i32_0 = arith.constant 0 : i32
    %c0_i32_1 = arith.constant 0 : i32
    return %c0_i32, %c0_i32_0 : i32, i32
  }
  func.func @transform_4(%arg0: i32) -> (i32, i32) {
    %c0_i32 = arith.constant 0 : i32
    %c0_i32_0 = arith.constant 0 : i32
    %c0_i32_1 = arith.constant 0 : i32
    return %c0_i32, %c0_i32_0 : i32, i32
  }
  func.func @transform_5(%arg0: i32) -> (i32, i32) {
    %c0_i32 = arith.constant 0 : i32
    %c0_i32_0 = arith.constant 0 : i32
    %c0_i32_1 = arith.constant 0 : i32
    return %c0_i32, %c0_i32_0 : i32, i32
  }
  func.func @transform_6(%arg0: i32) -> (i32, i32) {
    %c0_i32 = arith.constant 0 : i32
    %c0_i32_0 = arith.constant 0 : i32
    %c0_i32_1 = arith.constant 0 : i32
    return %c0_i32, %c0_i32_0 : i32, i32
  }
  func.func @transform_7(%arg0: i32) -> (i32, i32) {
    %c0_i32 = arith.constant 0 : i32
    %c0_i32_0 = arith.constant 0 : i32
    %c0_i32_1 = arith.constant 0 : i32
    return %c0_i32, %c0_i32_0 : i32, i32
  }
  func.func @transform_8(%arg0: i32) -> (i32, i32) {
    %c0_i32 = arith.constant 0 : i32
    %c0_i32_0 = arith.constant 0 : i32
    %c0_i32_1 = arith.constant 0 : i32
    return %c0_i32, %c0_i32_0 : i32, i32
  }
  func.func @transform_9(%arg0: i32) -> (i32, i32) {
    %c0_i32 = arith.constant 0 : i32
    %c0_i32_0 = arith.constant 0 : i32
    %c0_i32_1 = arith.constant 0 : i32
    return %c0_i32, %c0_i32_0 : i32, i32
  }
  func.func @transform_10(%arg0: i32) -> (i32, i32) {
    %c0_i32 = arith.constant 0 : i32
    %c0_i32_0 = arith.constant 0 : i32
    %c0_i32_1 = arith.constant 0 : i32
    return %c0_i32, %c0_i32_0 : i32, i32
  }
  func.func @transform_11(%arg0: i32) -> (i32, i32) {
    %c0_i32 = arith.constant 0 : i32
    %c0_i32_0 = arith.constant 0 : i32
    %c0_i32_1 = arith.constant 0 : i32
    return %c0_i32, %c0_i32_0 : i32, i32
  }
  func.func @transform_12(%arg0: i32) -> (i32, i32) {
    %c0_i32 = arith.constant 0 : i32
    %c0_i32_0 = arith.constant 0 : i32
    %c0_i32_1 = arith.constant 0 : i32
    return %c0_i32, %c0_i32_0 : i32, i32
  }
  func.func @transform_13(%arg0: i32) -> (i32, i32) {
    %c0_i32 = arith.constant 0 : i32
    %c0_i32_0 = arith.constant 0 : i32
    return %arg0, %c0_i32 : i32, i32
  }
}

</mosaic_0001>

<llo_original>
// kernel: autoencoder_forward.1
$region0: #{autoencoder_forward.1}
  #allocation0 [shape = 'u32[]', space=smem, size = 0x4, offset = 0x4, fixed_abs, tag = 'smem constant byte address 0x4 - core index']
  #allocation1 [shape = 'u32[144,128]{1,0:T(1,128)}', space=vmem, size = 0x12000, scoped, tag = 'internal scratch']
  %s0 = inlined_call_operand.vmem [shape: f32[1,128], index: 0, kind: input, shape index: {}]
  %s1 = inlined_call_operand.vmem [shape: bf16[128,256], index: 1, kind: input, shape index: {}]
  %s2 = inlined_call_operand.vmem [shape: f32[1,256], index: 2, kind: input, shape index: {}]
  %s3 = inlined_call_operand.vmem [shape: bf16[256,192], index: 3, kind: input, shape index: {}]
  %s4 = inlined_call_operand.vmem [shape: f32[1,192], index: 4, kind: input, shape index: {}]
  %s5 = inlined_call_operand.vmem [shape: bf16[192,1024], index: 5, kind: input, shape index: {}]
  %s6 = inlined_call_operand.vmem [shape: f32[1,1024], index: 6, kind: input, shape index: {}]
  %s7 = inlined_call_operand.vmem [shape: bf16[1024,192], index: 7, kind: input, shape index: {}]
  %s8 = inlined_call_operand.vmem [shape: f32[1,192], index: 8, kind: input, shape index: {}]
  %s9 = inlined_call_operand.vmem [shape: bf16[192,256], index: 9, kind: input, shape index: {}]
  %s10 = inlined_call_operand.vmem [shape: f32[1,256], index: 10, kind: input, shape index: {}]
  %s11 = inlined_call_operand.vmem [shape: bf16[256,128], index: 11, kind: input, shape index: {}]
  %s12 = inlined_call_operand.vmem [shape: f32[1,128], index: 12, kind: input, shape index: {}]
  %s13 = inlined_call_operand.vmem [shape: f32[1,128], index: 13, kind: output, shape index: {}]
  %s14 = sld [smem:[#allocation0]]
  $region92: #{autoencoder_forward.1} parent=0
    _
  %s16 = ssub.s32 1, %s14
  %s17 = scalar_select 0, %s16, %s14
  $region1: #{autoencoder_forward.1} parent=0
    #allocation2 [shape = 'u8[4096]{0}', space=vmem, size = 0x1000, scoped, tag = 'output window, operand 0, single buffered']
    // Predicated region
    $region2: #{autoencoder_forward.1} parent=1 // pred_check
      _
    $region3: #{autoencoder_forward.1} parent=1 // pred_check_branch
      %19 = sbr.rel (0) target = $region5
    $region4: #{autoencoder_forward.1} parent=1 // pred_region
      _
    $region5: #{autoencoder_forward.1} parent=1 // pred_fallthru
      _
    // Predicated region
    $region6: #{autoencoder_forward.1} parent=1 // pred_check
      _
    $region7: #{autoencoder_forward.1} parent=1 // pred_check_branch
      %21 = sbr.rel (0) target = $region9
    $region8: #{autoencoder_forward.1} parent=1 // pred_region
      _
    $region9: #{autoencoder_forward.1} parent=1 // pred_fallthru
      _
    // Predicated region
    $region10: #{autoencoder_forward.1} parent=1 // pred_check
      _
    $region11: #{autoencoder_forward.1} parent=1 // pred_check_branch
      %23 = sbr.rel (0) target = $region13
    $region12: #{autoencoder_forward.1} parent=1 // pred_region
      _
    $region13: #{autoencoder_forward.1} parent=1 // pred_fallthru
      _
    // Predicated region
    $region14: #{autoencoder_forward.1} parent=1 // pred_check
      _
    $region15: #{autoencoder_forward.1} parent=1 // pred_check_branch
      %25 = sbr.rel (0) target = $region17
    $region16: #{autoencoder_forward.1} parent=1 // pred_region
      _
    $region17: #{autoencoder_forward.1} parent=1 // pred_fallthru
      _
    // Predicated region
    $region18: #{autoencoder_forward.1} parent=1 // pred_check
      _
    $region19: #{autoencoder_forward.1} parent=1 // pred_check_branch
      %27 = sbr.rel (0) target = $region21
    $region20: #{autoencoder_forward.1} parent=1 // pred_region
      _
    $region21: #{autoencoder_forward.1} parent=1 // pred_fallthru
      _
    // Predicated region
    $region22: #{autoencoder_forward.1} parent=1 // pred_check
      _
    $region23: #{autoencoder_forward.1} parent=1 // pred_check_branch
      %29 = sbr.rel (0) target = $region25
    $region24: #{autoencoder_forward.1} parent=1 // pred_region
      _
    $region25: #{autoencoder_forward.1} parent=1 // pred_fallthru
      _
    // Predicated region
    $region26: #{autoencoder_forward.1} parent=1 // pred_check
      _
    $region27: #{autoencoder_forward.1} parent=1 // pred_check_branch
      %31 = sbr.rel (0) target = $region29
    $region28: #{autoencoder_forward.1} parent=1 // pred_region
      _
    $region29: #{autoencoder_forward.1} parent=1 // pred_fallthru
      _
    // Predicated region
    $region30: #{autoencoder_forward.1} parent=1 // pred_check
      _
    $region31: #{autoencoder_forward.1} parent=1 // pred_check_branch
      %33 = sbr.rel (0) target = $region33
    $region32: #{autoencoder_forward.1} parent=1 // pred_region
      _
    $region33: #{autoencoder_forward.1} parent=1 // pred_fallthru
      _
    // Predicated region
    $region34: #{autoencoder_forward.1} parent=1 // pred_check
      _
    $region35: #{autoencoder_forward.1} parent=1 // pred_check_branch
      %35 = sbr.rel (0) target = $region37
    $region36: #{autoencoder_forward.1} parent=1 // pred_region
      _
    $region37: #{autoencoder_forward.1} parent=1 // pred_fallthru
      _
    // Predicated region
    $region38: #{autoencoder_forward.1} parent=1 // pred_check
      _
    $region39: #{autoencoder_forward.1} parent=1 // pred_check_branch
      %37 = sbr.rel (0) target = $region41
    $region40: #{autoencoder_forward.1} parent=1 // pred_region
      _
    $region41: #{autoencoder_forward.1} parent=1 // pred_fallthru
      _
    // Predicated region
    $region42: #{autoencoder_forward.1} parent=1 // pred_check
      _
    $region43: #{autoencoder_forward.1} parent=1 // pred_check_branch
      %39 = sbr.rel (0) target = $region45
    $region44: #{autoencoder_forward.1} parent=1 // pred_region
      _
    $region45: #{autoencoder_forward.1} parent=1 // pred_fallthru
      _
    // Predicated region
    $region46: #{autoencoder_forward.1} parent=1 // pred_check
      _
    $region47: #{autoencoder_forward.1} parent=1 // pred_check_branch
      %41 = sbr.rel (0) target = $region49
    $region48: #{autoencoder_forward.1} parent=1 // pred_region
      _
    $region49: #{autoencoder_forward.1} parent=1 // pred_fallthru
      _
    // Predicated region
    $region50: #{autoencoder_forward.1} parent=1 // pred_check
      _
    $region51: #{autoencoder_forward.1} parent=1 // pred_check_branch
      %43 = sbr.rel (0) target = $region53
    $region52: #{autoencoder_forward.1} parent=1 // pred_region
      _
    $region53: #{autoencoder_forward.1} parent=1 // pred_fallthru
      _
    %v45 = vld [vmem:[%s0] sm:$0xff]
    %v46 = vpack.c.bf16 %v45, %v45
    %v47 = vld [vmem:[%s1] sm:$0xff]
    %v48 = vld [vmem:[%s1 + $0x8] sm:$0xff]
    %v49 = vld [vmem:[%s1 + $0x10] sm:$0xff]
    %v50 = vld [vmem:[%s1 + $0x18] sm:$0xff]
    %v51 = vld [vmem:[%s1 + $0x20] sm:$0xff]
    %v52 = vld [vmem:[%s1 + $0x28] sm:$0xff]
    %v53 = vld [vmem:[%s1 + $0x30] sm:$0xff]
    %v54 = vld [vmem:[%s1 + $0x38] sm:$0xff]
    %v55 = vld [vmem:[%s1 + $0x40] sm:$0xff]
    %v56 = vld [vmem:[%s1 + $0x48] sm:$0xff]
    %v57 = vld [vmem:[%s1 + $0x50] sm:$0xff]
    %v58 = vld [vmem:[%s1 + $0x58] sm:$0xff]
    %v59 = vld [vmem:[%s1 + $0x60] sm:$0xff]
    %v60 = vld [vmem:[%s1 + $0x68] sm:$0xff]
    %v61 = vld [vmem:[%s1 + $0x70] sm:$0xff]
    %v62 = vld [vmem:[%s1 + $0x78] sm:$0xff]
    %v63 = vld [vmem:[%s2] sm:$0x3]
    %v65 = vlaneseq
    %v66 = vshrl.u32 %v65, 7
    %v67 = vsub.s32 0, %v66
    %v68 = vrot.slane %v63, %v67
    %v69 = vlaneseq
    %v70 = vshrl.u32 %v69, 7
    %v71 = vsub.s32 1, %v70
    %v72 = vrot.slane %v63, %v71
    %v91 = vunpack.c.l.b16 %v47
    %v92 = vunpack.c.h.b16 %v47
    %v93 = vunpack.c.l.b16 %v48
    %v94 = vunpack.c.h.b16 %v48
    %v95 = vunpack.c.l.b16 %v49
    %v96 = vunpack.c.h.b16 %v49
    %v97 = vunpack.c.l.b16 %v50
    %v98 = vunpack.c.h.b16 %v50
    %v99 = vunpack.c.l.b16 %v51
    %v100 = vunpack.c.h.b16 %v51
    %v101 = vunpack.c.l.b16 %v52
    %v102 = vunpack.c.h.b16 %v52
    %v103 = vunpack.c.l.b16 %v53
    %v104 = vunpack.c.h.b16 %v53
    %v105 = vunpack.c.l.b16 %v54
    %v106 = vunpack.c.h.b16 %v54
    %v107 = vunpack.c.l.b16 %v55
    %v108 = vunpack.c.h.b16 %v55
    %v109 = vunpack.c.l.b16 %v56
    %v110 = vunpack.c.h.b16 %v56
    %v111 = vunpack.c.l.b16 %v57
    %v112 = vunpack.c.h.b16 %v57
    %v113 = vunpack.c.l.b16 %v58
    %v114 = vunpack.c.h.b16 %v58
    %v115 = vunpack.c.l.b16 %v59
    %v116 = vunpack.c.h.b16 %v59
    %v117 = vunpack.c.l.b16 %v60
    %v118 = vunpack.c.h.b16 %v60
    %v119 = vunpack.c.l.b16 %v61
    %v120 = vunpack.c.h.b16 %v61
    %v121 = vunpack.c.l.b16 %v62
    %v122 = vunpack.c.h.b16 %v62
    %v123 = vpack.c.b16 %v93, %v91
    %v124 = vpack.c.b16 %v94, %v92
    %v125 = vpack.c.b16 %v97, %v95
    %v126 = vpack.c.b16 %v98, %v96
    %v127 = vpack.c.b16 %v101, %v99
    %v128 = vpack.c.b16 %v102, %v100
    %v129 = vpack.c.b16 %v105, %v103
    %v130 = vpack.c.b16 %v106, %v104
    %v131 = vpack.c.b16 %v109, %v107
    %v132 = vpack.c.b16 %v110, %v108
    %v133 = vpack.c.b16 %v113, %v111
    %v134 = vpack.c.b16 %v114, %v112
    %v135 = vpack.c.b16 %v117, %v115
    %v136 = vpack.c.b16 %v118, %v116
    %v137 = vpack.c.b16 %v121, %v119
    %v138 = vpack.c.b16 %v122, %v120
    %155 = vmatprep.subr.bf16.mxu0 %v124
    %156 = vmatpush1.bf16.msra.mxu0 %v123
    %157 = vmatprep.subr.bf16.mxu0 %v126
    %158 = vmatpush1.bf16.msra.mxu0 %v125
    %159 = vmatprep.subr.bf16.mxu0 %v128
    %160 = vmatpush1.bf16.msra.mxu0 %v127
    %161 = vmatprep.subr.bf16.mxu0 %v130
    %162 = vmatpush1.bf16.msra.mxu0 %v129
    %163 = vmatprep.subr.bf16.mxu0 %v132
    %164 = vmatpush1.bf16.msra.mxu0 %v131
    %165 = vmatprep.subr.bf16.mxu0 %v134
    %166 = vmatpush1.bf16.msra.mxu0 %v133
    %167 = vmatprep.subr.bf16.mxu0 %v136
    %168 = vmatpush1.bf16.msra.mxu0 %v135
    %169 = vmatprep.subr.bf16.mxu0 %v138
    %170 = vmatpush1.bf16.msra.mxu0 %v137
    %171 = vmatprep.subr.bf16.mxu0 0
    %172 = vmatpush1.bf16.msra.mxu0 0
    %173 = vmatprep.subr.bf16.mxu0 0
    %174 = vmatpush1.bf16.msra.mxu0 0
    %175 = vmatprep.subr.bf16.mxu0 0
    %176 = vmatpush1.bf16.msra.mxu0 0
    %177 = vmatprep.subr.bf16.mxu0 0
    %178 = vmatpush1.bf16.msra.mxu0 0
    %179 = vmatprep.subr.bf16.mxu0 0
    %180 = vmatpush1.bf16.msra.mxu0 0
    %181 = vmatprep.subr.bf16.mxu0 0
    %182 = vmatpush1.bf16.msra.mxu0 0
    %183 = vmatprep.subr.bf16.mxu0 0
    %184 = vmatpush1.bf16.msra.mxu0 0
    %185 = vmatprep.subr.bf16.mxu0 0
    %186 = vmatpush1.bf16.msra.mxu0 0
    %187 = vmatprep.mubr.bf16.mxu0 0
    %188 = vmatmul.mubr.bf16.gmra.mrb[0].mxu0 %v46
    %v189 = vpop.f32.mrb[0].mxu0
    %v190 = vadd.f32 %v68, %v189
    %v191 = vpop.f32.mrb[0].mxu0
    %v192 = vadd.f32 %v72, %v191
    %v193 = vpop.f32.mrb[0].mxu0
    %v194 = vpop.f32.mrb[0].mxu0
    %195 = vdwg.mxu0
    %v196 = vmin.f32 %v190, 0.0
    %v197 = vmin.f32 %v192, 0.0
    %v198 = vmul.f32 %v196, 1.442695
    %v199 = vpow.pop %v198
    %v200 = vmul.f32 %v197, 1.442695
    %v201 = vpow.pop %v200
    %v202 = vmul.f32 %v199, 1.6732632
    %v203 = vmul.f32 %v201, 1.6732632
    %v204 = vsub.f32 %v202, 1.6732632
    %v205 = vsub.f32 %v203, 1.6732632
    %vm206 = vcmp.ge.f32.partialorder %v190, 0.0
    %vm207 = vcmp.ge.f32.partialorder %v192, 0.0
    %v208 = vsel %vm206, %v190, %v204
    %v209 = vsel %vm207, %v192, %v205
    %v210 = vmul.f32 %v208, 1.050701
    %v211 = vmul.f32 %v209, 1.050701
    %v212 = vpack.c.bf16 %v210, %v210
    %v213 = vpack.c.bf16 %v211, %v211
    %v214 = vld [vmem:[%s3] sm:$0xff]
    %v215 = vld [vmem:[%s3 + $0x8] sm:$0xff]
    %v216 = vld [vmem:[%s3 + $0x10] sm:$0xff]
    %v217 = vld [vmem:[%s3 + $0x18] sm:$0xff]
    %v218 = vld [vmem:[%s3 + $0x20] sm:$0xff]
    %v219 = vld [vmem:[%s3 + $0x28] sm:$0xff]
    %v220 = vld [vmem:[%s3 + $0x30] sm:$0xff]
    %v221 = vld [vmem:[%s3 + $0x38] sm:$0xff]
    %v222 = vld [vmem:[%s3 + $0x40] sm:$0xff]
    %v223 = vld [vmem:[%s3 + $0x48] sm:$0xff]
    %v224 = vld [vmem:[%s3 + $0x50] sm:$0xff]
    %v225 = vld [vmem:[%s3 + $0x58] sm:$0xff]
    %v226 = vld [vmem:[%s3 + $0x60] sm:$0xff]
    %v227 = vld [vmem:[%s3 + $0x68] sm:$0xff]
    %v228 = vld [vmem:[%s3 + $0x70] sm:$0xff]
    %v229 = vld [vmem:[%s3 + $0x78] sm:$0xff]
    %v230 = vld [vmem:[%s3 + $0x80] sm:$0xff]
    %v231 = vld [vmem:[%s3 + $0x88] sm:$0xff]
    %v232 = vld [vmem:[%s3 + $0x90] sm:$0xff]
    %v233 = vld [vmem:[%s3 + $0x98] sm:$0xff]
    %v234 = vld [vmem:[%s3 + $0xa0] sm:$0xff]
    %v235 = vld [vmem:[%s3 + $0xa8] sm:$0xff]
    %v236 = vld [vmem:[%s3 + $0xb0] sm:$0xff]
    %v237 = vld [vmem:[%s3 + $0xb8] sm:$0xff]
    %v238 = vld [vmem:[%s3 + $0xc0] sm:$0xff]
    %v239 = vld [vmem:[%s3 + $0xc8] sm:$0xff]
    %v240 = vld [vmem:[%s3 + $0xd0] sm:$0xff]
    %v241 = vld [vmem:[%s3 + $0xd8] sm:$0xff]
    %v242 = vld [vmem:[%s3 + $0xe0] sm:$0xff]
    %v243 = vld [vmem:[%s3 + $0xe8] sm:$0xff]
    %v244 = vld [vmem:[%s3 + $0xf0] sm:$0xff]
    %v245 = vld [vmem:[%s3 + $0xf8] sm:$0xff]
    %v246 = vld [vmem:[%s4] sm:$0x3]
    %v248 = vlaneseq
    %v249 = vshrl.u32 %v248, 7
    %v250 = vsub.s32 0, %v249
    %v251 = vrot.slane %v246, %v250
    %v252 = vlaneseq
    %v253 = vshrl.u32 %v252, 7
    %v254 = vsub.s32 1, %v253
    %v255 = vrot.slane %v246, %v254
    %v290 = vunpack.c.l.b16 %v214
    %v291 = vunpack.c.h.b16 %v214
    %v292 = vunpack.c.l.b16 %v215
    %v293 = vunpack.c.h.b16 %v215
    %v294 = vunpack.c.l.b16 %v216
    %v295 = vunpack.c.h.b16 %v216
    %v296 = vunpack.c.l.b16 %v217
    %v297 = vunpack.c.h.b16 %v217
    %v298 = vunpack.c.l.b16 %v218
    %v299 = vunpack.c.h.b16 %v218
    %v300 = vunpack.c.l.b16 %v219
    %v301 = vunpack.c.h.b16 %v219
    %v302 = vunpack.c.l.b16 %v220
    %v303 = vunpack.c.h.b16 %v220
    %v304 = vunpack.c.l.b16 %v221
    %v305 = vunpack.c.h.b16 %v221
    %v306 = vunpack.c.l.b16 %v222
    %v307 = vunpack.c.h.b16 %v222
    %v308 = vunpack.c.l.b16 %v223
    %v309 = vunpack.c.h.b16 %v223
    %v310 = vunpack.c.l.b16 %v224
    %v311 = vunpack.c.h.b16 %v224
    %v312 = vunpack.c.l.b16 %v225
    %v313 = vunpack.c.h.b16 %v225
    %v314 = vunpack.c.l.b16 %v226
    %v315 = vunpack.c.h.b16 %v226
    %v316 = vunpack.c.l.b16 %v227
    %v317 = vunpack.c.h.b16 %v227
    %v318 = vunpack.c.l.b16 %v228
    %v319 = vunpack.c.h.b16 %v228
    %v320 = vunpack.c.l.b16 %v229
    %v321 = vunpack.c.h.b16 %v229
    %v322 = vunpack.c.l.b16 %v230
    %v323 = vunpack.c.h.b16 %v230
    %v324 = vunpack.c.l.b16 %v231
    %v325 = vunpack.c.h.b16 %v231
    %v326 = vunpack.c.l.b16 %v232
    %v327 = vunpack.c.h.b16 %v232
    %v328 = vunpack.c.l.b16 %v233
    %v329 = vunpack.c.h.b16 %v233
    %v330 = vunpack.c.l.b16 %v234
    %v331 = vunpack.c.h.b16 %v234
    %v332 = vunpack.c.l.b16 %v235
    %v333 = vunpack.c.h.b16 %v235
    %v334 = vunpack.c.l.b16 %v236
    %v335 = vunpack.c.h.b16 %v236
    %v336 = vunpack.c.l.b16 %v237
    %v337 = vunpack.c.h.b16 %v237
    %v338 = vunpack.c.l.b16 %v238
    %v339 = vunpack.c.h.b16 %v238
    %v340 = vunpack.c.l.b16 %v239
    %v341 = vunpack.c.h.b16 %v239
    %v342 = vunpack.c.l.b16 %v240
    %v343 = vunpack.c.h.b16 %v240
    %v344 = vunpack.c.l.b16 %v241
    %v345 = vunpack.c.h.b16 %v241
    %v346 = vunpack.c.l.b16 %v242
    %v347 = vunpack.c.h.b16 %v242
    %v348 = vunpack.c.l.b16 %v243
    %v349 = vunpack.c.h.b16 %v243
    %v350 = vunpack.c.l.b16 %v244
    %v351 = vunpack.c.h.b16 %v244
    %v352 = vunpack.c.l.b16 %v245
    %v353 = vunpack.c.h.b16 %v245
    %v354 = vpack.c.b16 %v292, %v290
    %v355 = vpack.c.b16 %v293, %v291
    %v356 = vpack.c.b16 %v296, %v294
    %v357 = vpack.c.b16 %v297, %v295
    %v358 = vpack.c.b16 %v300, %v298
    %v359 = vpack.c.b16 %v301, %v299
    %v360 = vpack.c.b16 %v304, %v302
    %v361 = vpack.c.b16 %v305, %v303
    %v362 = vpack.c.b16 %v308, %v306
    %v363 = vpack.c.b16 %v309, %v307
    %v364 = vpack.c.b16 %v312, %v310
    %v365 = vpack.c.b16 %v313, %v311
    %v366 = vpack.c.b16 %v316, %v314
    %v367 = vpack.c.b16 %v317, %v315
    %v368 = vpack.c.b16 %v320, %v318
    %v369 = vpack.c.b16 %v321, %v319
    %v370 = vpack.c.b16 %v324, %v322
    %v371 = vpack.c.b16 %v325, %v323
    %v372 = vpack.c.b16 %v328, %v326
    %v373 = vpack.c.b16 %v329, %v327
    %v374 = vpack.c.b16 %v332, %v330
    %v375 = vpack.c.b16 %v333, %v331
    %v376 = vpack.c.b16 %v336, %v334
    %v377 = vpack.c.b16 %v337, %v335
    %v378 = vpack.c.b16 %v340, %v338
    %v379 = vpack.c.b16 %v341, %v339
    %v380 = vpack.c.b16 %v344, %v342
    %v381 = vpack.c.b16 %v345, %v343
    %v382 = vpack.c.b16 %v348, %v346
    %v383 = vpack.c.b16 %v349, %v347
    %v384 = vpack.c.b16 %v352, %v350
    %v385 = vpack.c.b16 %v353, %v351
    %418 = vmatprep.subr.bf16.mxu0 %v355
    %419 = vmatpush1.bf16.msra.mxu0 %v354
    %420 = vmatprep.subr.bf16.mxu0 %v357
    %421 = vmatpush1.bf16.msra.mxu0 %v356
    %422 = vmatprep.subr.bf16.mxu0 %v359
    %423 = vmatpush1.bf16.msra.mxu0 %v358
    %424 = vmatprep.subr.bf16.mxu0 %v361
    %425 = vmatpush1.bf16.msra.mxu0 %v360
    %426 = vmatprep.subr.bf16.mxu0 %v363
    %427 = vmatpush1.bf16.msra.mxu0 %v362
    %428 = vmatprep.subr.bf16.mxu0 %v365
    %429 = vmatpush1.bf16.msra.mxu0 %v364
    %430 = vmatprep.subr.bf16.mxu0 %v367
    %431 = vmatpush1.bf16.msra.mxu0 %v366
    %432 = vmatprep.subr.bf16.mxu0 %v369
    %433 = vmatpush1.bf16.msra.mxu0 %v368
    %434 = vmatprep.subr.bf16.mxu0 %v371
    %435 = vmatpush1.bf16.msra.mxu0 %v370
    %436 = vmatprep.subr.bf16.mxu0 %v373
    %437 = vmatpush1.bf16.msra.mxu0 %v372
    %438 = vmatprep.subr.bf16.mxu0 %v375
    %439 = vmatpush1.bf16.msra.mxu0 %v374
    %440 = vmatprep.subr.bf16.mxu0 %v377
    %441 = vmatpush1.bf16.msra.mxu0 %v376
    %442 = vmatprep.subr.bf16.mxu0 %v379
    %443 = vmatpush1.bf16.msra.mxu0 %v378
    %444 = vmatprep.subr.bf16.mxu0 %v381
    %445 = vmatpush1.bf16.msra.mxu0 %v380
    %446 = vmatprep.subr.bf16.mxu0 %v383
    %447 = vmatpush1.bf16.msra.mxu0 %v382
    %448 = vmatprep.subr.bf16.mxu0 %v385
    %449 = vmatpush1.bf16.msra.mxu0 %v384
    %450 = vmatprep.mubr.bf16.mxu0 %v213
    %451 = vmatmul.mubr.bf16.gmra.mrb[0].mxu0 %v212
    %v452 = vpop.f32.mrb[0].mxu0
    %v453 = vadd.f32 %v251, %v452
    %v454 = vpop.f32.mrb[0].mxu0
    %v455 = vadd.f32 %v255, %v454
    %v456 = vpop.f32.mrb[0].mxu0
    %v457 = vpop.f32.mrb[0].mxu0
    %458 = vdwg.mxu0
    %v459 = vmin.f32 %v453, 0.0
    %v460 = vmin.f32 %v455, 0.0
    %v461 = vmul.f32 %v459, 1.442695
    %v462 = vpow.pop %v461
    %v463 = vmul.f32 %v460, 1.442695
    %v464 = vpow.pop %v463
    %v465 = vmul.f32 %v462, 1.6732632
    %v466 = vmul.f32 %v464, 1.6732632
    %v467 = vsub.f32 %v465, 1.6732632
    %v468 = vsub.f32 %v466, 1.6732632
    %vm469 = vcmp.ge.f32.partialorder %v453, 0.0
    %vm470 = vcmp.ge.f32.partialorder %v455, 0.0
    %v471 = vsel %vm469, %v453, %v467
    %v472 = vsel %vm470, %v455, %v468
    %v473 = vmul.f32 %v471, 1.050701
    %v474 = vmul.f32 %v472, 1.050701
    %v475 = vpack.c.bf16 %v473, %v473
    %v476 = vpack.c.bf16 %v474, %v474
    %v477 = vld [vmem:[%s5] sm:$0xff]
    %v478 = vld [vmem:[%s5 + $0x8] sm:$0xff]
    %v479 = vld [vmem:[%s5 + $0x10] sm:$0xff]
    %v480 = vld [vmem:[%s5 + $0x18] sm:$0xff]
    %v481 = vld [vmem:[%s5 + $0x20] sm:$0xff]
    %v482 = vld [vmem:[%s5 + $0x28] sm:$0xff]
    %v483 = vld [vmem:[%s5 + $0x30] sm:$0xff]
    %v484 = vld [vmem:[%s5 + $0x38] sm:$0xff]
    %v485 = vld [vmem:[%s5 + $0x40] sm:$0xff]
    %v486 = vld [vmem:[%s5 + $0x48] sm:$0xff]
    %v487 = vld [vmem:[%s5 + $0x50] sm:$0xff]
    %v488 = vld [vmem:[%s5 + $0x58] sm:$0xff]
    %v489 = vld [vmem:[%s5 + $0x60] sm:$0xff]
    %v490 = vld [vmem:[%s5 + $0x68] sm:$0xff]
    %v491 = vld [vmem:[%s5 + $0x70] sm:$0xff]
    %v492 = vld [vmem:[%s5 + $0x78] sm:$0xff]
    %v493 = vld [vmem:[%s5 + $0x80] sm:$0xff]
    %v494 = vld [vmem:[%s5 + $0x88] sm:$0xff]
    %v495 = vld [vmem:[%s5 + $0x90] sm:$0xff]
    %v496 = vld [vmem:[%s5 + $0x98] sm:$0xff]
    %v497 = vld [vmem:[%s5 + $0xa0] sm:$0xff]
    %v498 = vld [vmem:[%s5 + $0xa8] sm:$0xff]
    %v499 = vld [vmem:[%s5 + $0xb0] sm:$0xff]
    %v500 = vld [vmem:[%s5 + $0xb8] sm:$0xff]
    %v501 = vld [vmem:[%s5 + $0xc0] sm:$0xff]
    %v502 = vld [vmem:[%s5 + $0xc8] sm:$0xff]
    %v503 = vld [vmem:[%s5 + $0xd0] sm:$0xff]
    %v504 = vld [vmem:[%s5 + $0xd8] sm:$0xff]
    %v505 = vld [vmem:[%s5 + $0xe0] sm:$0xff]
    %v506 = vld [vmem:[%s5 + $0xe8] sm:$0xff]
    %v507 = vld [vmem:[%s5 + $0xf0] sm:$0xff]
    %v508 = vld [vmem:[%s5 + $0xf8] sm:$0xff]
    %v509 = vld [vmem:[%s5 + $0x100] sm:$0xff]
    %v510 = vld [vmem:[%s5 + $0x108] sm:$0xff]
    %v511 = vld [vmem:[%s5 + $0x110] sm:$0xff]
    %v512 = vld [vmem:[%s5 + $0x118] sm:$0xff]
    %v513 = vld [vmem:[%s5 + $0x120] sm:$0xff]
    %v514 = vld [vmem:[%s5 + $0x128] sm:$0xff]
    %v515 = vld [vmem:[%s5 + $0x130] sm:$0xff]
    %v516 = vld [vmem:[%s5 + $0x138] sm:$0xff]
    %v517 = vld [vmem:[%s5 + $0x140] sm:$0xff]
    %v518 = vld [vmem:[%s5 + $0x148] sm:$0xff]
    %v519 = vld [vmem:[%s5 + $0x150] sm:$0xff]
    %v520 = vld [vmem:[%s5 + $0x158] sm:$0xff]
    %v521 = vld [vmem:[%s5 + $0x160] sm:$0xff]
    %v522 = vld [vmem:[%s5 + $0x168] sm:$0xff]
    %v523 = vld [vmem:[%s5 + $0x170] sm:$0xff]
    %v524 = vld [vmem:[%s5 + $0x178] sm:$0xff]
    %v525 = vld [vmem:[%s5 + $0x180] sm:$0xff]
    %v526 = vld [vmem:[%s5 + $0x188] sm:$0xff]
    %v527 = vld [vmem:[%s5 + $0x190] sm:$0xff]
    %v528 = vld [vmem:[%s5 + $0x198] sm:$0xff]
    %v529 = vld [vmem:[%s5 + $0x1a0] sm:$0xff]
    %v530 = vld [vmem:[%s5 + $0x1a8] sm:$0xff]
    %v531 = vld [vmem:[%s5 + $0x1b0] sm:$0xff]
    %v532 = vld [vmem:[%s5 + $0x1b8] sm:$0xff]
    %v533 = vld [vmem:[%s5 + $0x1c0] sm:$0xff]
    %v534 = vld [vmem:[%s5 + $0x1c8] sm:$0xff]
    %v535 = vld [vmem:[%s5 + $0x1d0] sm:$0xff]
    %v536 = vld [vmem:[%s5 + $0x1d8] sm:$0xff]
    %v537 = vld [vmem:[%s5 + $0x1e0] sm:$0xff]
    %v538 = vld [vmem:[%s5 + $0x1e8] sm:$0xff]
    %v539 = vld [vmem:[%s5 + $0x1f0] sm:$0xff]
    %v540 = vld [vmem:[%s5 + $0x1f8] sm:$0xff]
    %v541 = vld [vmem:[%s5 + $0x200] sm:$0xff]
    %v542 = vld [vmem:[%s5 + $0x208] sm:$0xff]
    %v543 = vld [vmem:[%s5 + $0x210] sm:$0xff]
    %v544 = vld [vmem:[%s5 + $0x218] sm:$0xff]
    %v545 = vld [vmem:[%s5 + $0x220] sm:$0xff]
    %v546 = vld [vmem:[%s5 + $0x228] sm:$0xff]
    %v547 = vld [vmem:[%s5 + $0x230] sm:$0xff]
    %v548 = vld [vmem:[%s5 + $0x238] sm:$0xff]
    %v549 = vld [vmem:[%s5 + $0x240] sm:$0xff]
    %v550 = vld [vmem:[%s5 + $0x248] sm:$0xff]
    %v551 = vld [vmem:[%s5 + $0x250] sm:$0xff]
    %v552 = vld [vmem:[%s5 + $0x258] sm:$0xff]
    %v553 = vld [vmem:[%s5 + $0x260] sm:$0xff]
    %v554 = vld [vmem:[%s5 + $0x268] sm:$0xff]
    %v555 = vld [vmem:[%s5 + $0x270] sm:$0xff]
    %v556 = vld [vmem:[%s5 + $0x278] sm:$0xff]
    %v557 = vld [vmem:[%s5 + $0x280] sm:$0xff]
    %v558 = vld [vmem:[%s5 + $0x288] sm:$0xff]
    %v559 = vld [vmem:[%s5 + $0x290] sm:$0xff]
    %v560 = vld [vmem:[%s5 + $0x298] sm:$0xff]
    %v561 = vld [vmem:[%s5 + $0x2a0] sm:$0xff]
    %v562 = vld [vmem:[%s5 + $0x2a8] sm:$0xff]
    %v563 = vld [vmem:[%s5 + $0x2b0] sm:$0xff]
    %v564 = vld [vmem:[%s5 + $0x2b8] sm:$0xff]
    %v565 = vld [vmem:[%s5 + $0x2c0] sm:$0xff]
    %v566 = vld [vmem:[%s5 + $0x2c8] sm:$0xff]
    %v567 = vld [vmem:[%s5 + $0x2d0] sm:$0xff]
    %v568 = vld [vmem:[%s5 + $0x2d8] sm:$0xff]
    %v569 = vld [vmem:[%s5 + $0x2e0] sm:$0xff]
    %v570 = vld [vmem:[%s5 + $0x2e8] sm:$0xff]
    %v571 = vld [vmem:[%s5 + $0x2f0] sm:$0xff]
    %v572 = vld [vmem:[%s5 + $0x2f8] sm:$0xff]
    %v573 = vld [vmem:[%s6] sm:$0xff]
    %v575 = vlaneseq
    %v576 = vshrl.u32 %v575, 7
    %v577 = vsub.s32 0, %v576
    %v578 = vrot.slane %v573, %v577
    %v579 = vlaneseq
    %v580 = vshrl.u32 %v579, 7
    %v581 = vsub.s32 1, %v580
    %v582 = vrot.slane %v573, %v581
    %v583 = vlaneseq
    %v584 = vshrl.u32 %v583, 7
    %v585 = vsub.s32 2, %v584
    %v586 = vrot.slane %v573, %v585
    %v587 = vlaneseq
    %v588 = vshrl.u32 %v587, 7
    %v589 = vsub.s32 3, %v588
    %v590 = vrot.slane %v573, %v589
    %v591 = vlaneseq
    %v592 = vshrl.u32 %v591, 7
    %v593 = vsub.s32 4, %v592
    %v594 = vrot.slane %v573, %v593
    %v595 = vlaneseq
    %v596 = vshrl.u32 %v595, 7
    %v597 = vsub.s32 5, %v596
    %v598 = vrot.slane %v573, %v597
    %v599 = vlaneseq
    %v600 = vshrl.u32 %v599, 7
    %v601 = vsub.s32 6, %v600
    %v602 = vrot.slane %v573, %v601
    %v603 = vlaneseq
    %v604 = vshrl.u32 %v603, 7
    %v605 = vsub.s32 7, %v604
    %v606 = vrot.slane %v573, %v605
    %v711 = vunpack.c.l.b16 %v477
    %v712 = vunpack.c.h.b16 %v477
    %v713 = vunpack.c.l.b16 %v478
    %v714 = vunpack.c.h.b16 %v478
    %v715 = vunpack.c.l.b16 %v479
    %v716 = vunpack.c.h.b16 %v479
    %v717 = vunpack.c.l.b16 %v480
    %v718 = vunpack.c.h.b16 %v480
    %v719 = vunpack.c.l.b16 %v481
    %v720 = vunpack.c.h.b16 %v481
    %v721 = vunpack.c.l.b16 %v482
    %v722 = vunpack.c.h.b16 %v482
    %v723 = vunpack.c.l.b16 %v483
    %v724 = vunpack.c.h.b16 %v483
    %v725 = vunpack.c.l.b16 %v484
    %v726 = vunpack.c.h.b16 %v484
    %v727 = vunpack.c.l.b16 %v485
    %v728 = vunpack.c.h.b16 %v485
    %v729 = vunpack.c.l.b16 %v486
    %v730 = vunpack.c.h.b16 %v486
    %v731 = vunpack.c.l.b16 %v487
    %v732 = vunpack.c.h.b16 %v487
    %v733 = vunpack.c.l.b16 %v488
    %v734 = vunpack.c.h.b16 %v488
    %v735 = vunpack.c.l.b16 %v489
    %v736 = vunpack.c.h.b16 %v489
    %v737 = vunpack.c.l.b16 %v490
    %v738 = vunpack.c.h.b16 %v490
    %v739 = vunpack.c.l.b16 %v491
    %v740 = vunpack.c.h.b16 %v491
    %v741 = vunpack.c.l.b16 %v492
    %v742 = vunpack.c.h.b16 %v492
    %v743 = vunpack.c.l.b16 %v493
    %v744 = vunpack.c.h.b16 %v493
    %v745 = vunpack.c.l.b16 %v494
    %v746 = vunpack.c.h.b16 %v494
    %v747 = vunpack.c.l.b16 %v495
    %v748 = vunpack.c.h.b16 %v495
    %v749 = vunpack.c.l.b16 %v496
    %v750 = vunpack.c.h.b16 %v496
    %v751 = vunpack.c.l.b16 %v497
    %v752 = vunpack.c.h.b16 %v497
    %v753 = vunpack.c.l.b16 %v498
    %v754 = vunpack.c.h.b16 %v498
    %v755 = vunpack.c.l.b16 %v499
    %v756 = vunpack.c.h.b16 %v499
    %v757 = vunpack.c.l.b16 %v500
    %v758 = vunpack.c.h.b16 %v500
    %v759 = vunpack.c.l.b16 %v501
    %v760 = vunpack.c.h.b16 %v501
    %v761 = vunpack.c.l.b16 %v502
    %v762 = vunpack.c.h.b16 %v502
    %v763 = vunpack.c.l.b16 %v503
    %v764 = vunpack.c.h.b16 %v503
    %v765 = vunpack.c.l.b16 %v504
    %v766 = vunpack.c.h.b16 %v504
    %v767 = vunpack.c.l.b16 %v505
    %v768 = vunpack.c.h.b16 %v505
    %v769 = vunpack.c.l.b16 %v506
    %v770 = vunpack.c.h.b16 %v506
    %v771 = vunpack.c.l.b16 %v507
    %v772 = vunpack.c.h.b16 %v507
    %v773 = vunpack.c.l.b16 %v508
    %v774 = vunpack.c.h.b16 %v508
    %v775 = vunpack.c.l.b16 %v509
    %v776 = vunpack.c.h.b16 %v509
    %v777 = vunpack.c.l.b16 %v510
    %v778 = vunpack.c.h.b16 %v510
    %v779 = vunpack.c.l.b16 %v511
    %v780 = vunpack.c.h.b16 %v511
    %v781 = vunpack.c.l.b16 %v512
    %v782 = vunpack.c.h.b16 %v512
    %v783 = vunpack.c.l.b16 %v513
    %v784 = vunpack.c.h.b16 %v513
    %v785 = vunpack.c.l.b16 %v514
    %v786 = vunpack.c.h.b16 %v514
    %v787 = vunpack.c.l.b16 %v515
    %v788 = vunpack.c.h.b16 %v515
    %v789 = vunpack.c.l.b16 %v516
    %v790 = vunpack.c.h.b16 %v516
    %v791 = vunpack.c.l.b16 %v517
    %v792 = vunpack.c.h.b16 %v517
    %v793 = vunpack.c.l.b16 %v518
    %v794 = vunpack.c.h.b16 %v518
    %v795 = vunpack.c.l.b16 %v519
    %v796 = vunpack.c.h.b16 %v519
    %v797 = vunpack.c.l.b16 %v520
    %v798 = vunpack.c.h.b16 %v520
    %v799 = vunpack.c.l.b16 %v521
    %v800 = vunpack.c.h.b16 %v521
    %v801 = vunpack.c.l.b16 %v522
    %v802 = vunpack.c.h.b16 %v522
    %v803 = vunpack.c.l.b16 %v523
    %v804 = vunpack.c.h.b16 %v523
    %v805 = vunpack.c.l.b16 %v524
    %v806 = vunpack.c.h.b16 %v524
    %v807 = vunpack.c.l.b16 %v525
    %v808 = vunpack.c.h.b16 %v525
    %v809 = vunpack.c.l.b16 %v526
    %v810 = vunpack.c.h.b16 %v526
    %v811 = vunpack.c.l.b16 %v527
    %v812 = vunpack.c.h.b16 %v527
    %v813 = vunpack.c.l.b16 %v528
    %v814 = vunpack.c.h.b16 %v528
    %v815 = vunpack.c.l.b16 %v529
    %v816 = vunpack.c.h.b16 %v529
    %v817 = vunpack.c.l.b16 %v530
    %v818 = vunpack.c.h.b16 %v530
    %v819 = vunpack.c.l.b16 %v531
    %v820 = vunpack.c.h.b16 %v531
    %v821 = vunpack.c.l.b16 %v532
    %v822 = vunpack.c.h.b16 %v532
    %v823 = vunpack.c.l.b16 %v533
    %v824 = vunpack.c.h.b16 %v533
    %v825 = vunpack.c.l.b16 %v534
    %v826 = vunpack.c.h.b16 %v534
    %v827 = vunpack.c.l.b16 %v535
    %v828 = vunpack.c.h.b16 %v535
    %v829 = vunpack.c.l.b16 %v536
    %v830 = vunpack.c.h.b16 %v536
    %v831 = vunpack.c.l.b16 %v537
    %v832 = vunpack.c.h.b16 %v537
    %v833 = vunpack.c.l.b16 %v538
    %v834 = vunpack.c.h.b16 %v538
    %v835 = vunpack.c.l.b16 %v539
    %v836 = vunpack.c.h.b16 %v539
    %v837 = vunpack.c.l.b16 %v540
    %v838 = vunpack.c.h.b16 %v540
    %v839 = vunpack.c.l.b16 %v541
    %v840 = vunpack.c.h.b16 %v541
    %v841 = vunpack.c.l.b16 %v542
    %v842 = vunpack.c.h.b16 %v542
    %v843 = vunpack.c.l.b16 %v543
    %v844 = vunpack.c.h.b16 %v543
    %v845 = vunpack.c.l.b16 %v544
    %v846 = vunpack.c.h.b16 %v544
    %v847 = vunpack.c.l.b16 %v545
    %v848 = vunpack.c.h.b16 %v545
    %v849 = vunpack.c.l.b16 %v546
    %v850 = vunpack.c.h.b16 %v546
    %v851 = vunpack.c.l.b16 %v547
    %v852 = vunpack.c.h.b16 %v547
    %v853 = vunpack.c.l.b16 %v548
    %v854 = vunpack.c.h.b16 %v548
    %v855 = vunpack.c.l.b16 %v549
    %v856 = vunpack.c.h.b16 %v549
    %v857 = vunpack.c.l.b16 %v550
    %v858 = vunpack.c.h.b16 %v550
    %v859 = vunpack.c.l.b16 %v551
    %v860 = vunpack.c.h.b16 %v551
    %v861 = vunpack.c.l.b16 %v552
    %v862 = vunpack.c.h.b16 %v552
    %v863 = vunpack.c.l.b16 %v553
    %v864 = vunpack.c.h.b16 %v553
    %v865 = vunpack.c.l.b16 %v554
    %v866 = vunpack.c.h.b16 %v554
    %v867 = vunpack.c.l.b16 %v555
    %v868 = vunpack.c.h.b16 %v555
    %v869 = vunpack.c.l.b16 %v556
    %v870 = vunpack.c.h.b16 %v556
    %v871 = vunpack.c.l.b16 %v557
    %v872 = vunpack.c.h.b16 %v557
    %v873 = vunpack.c.l.b16 %v558
    %v874 = vunpack.c.h.b16 %v558
    %v875 = vunpack.c.l.b16 %v559
    %v876 = vunpack.c.h.b16 %v559
    %v877 = vunpack.c.l.b16 %v560
    %v878 = vunpack.c.h.b16 %v560
    %v879 = vunpack.c.l.b16 %v561
    %v880 = vunpack.c.h.b16 %v561
    %v881 = vunpack.c.l.b16 %v562
    %v882 = vunpack.c.h.b16 %v562
    %v883 = vunpack.c.l.b16 %v563
    %v884 = vunpack.c.h.b16 %v563
    %v885 = vunpack.c.l.b16 %v564
    %v886 = vunpack.c.h.b16 %v564
    %v887 = vunpack.c.l.b16 %v565
    %v888 = vunpack.c.h.b16 %v565
    %v889 = vunpack.c.l.b16 %v566
    %v890 = vunpack.c.h.b16 %v566
    %v891 = vunpack.c.l.b16 %v567
    %v892 = vunpack.c.h.b16 %v567
    %v893 = vunpack.c.l.b16 %v568
    %v894 = vunpack.c.h.b16 %v568
    %v895 = vunpack.c.l.b16 %v569
    %v896 = vunpack.c.h.b16 %v569
    %v897 = vunpack.c.l.b16 %v570
    %v898 = vunpack.c.h.b16 %v570
    %v899 = vunpack.c.l.b16 %v571
    %v900 = vunpack.c.h.b16 %v571
    %v901 = vunpack.c.l.b16 %v572
    %v902 = vunpack.c.h.b16 %v572
    %v903 = vpack.c.b16 %v719, %v711
    %v904 = vpack.c.b16 %v720, %v712
    %v905 = vpack.c.b16 %v721, %v713
    %v906 = vpack.c.b16 %v722, %v714
    %v907 = vpack.c.b16 %v723, %v715
    %v908 = vpack.c.b16 %v724, %v716
    %v909 = vpack.c.b16 %v725, %v717
    %v910 = vpack.c.b16 %v726, %v718
    %v911 = vpack.c.b16 %v735, %v727
    %v912 = vpack.c.b16 %v736, %v728
    %v913 = vpack.c.b16 %v737, %v729
    %v914 = vpack.c.b16 %v738, %v730
    %v915 = vpack.c.b16 %v739, %v731
    %v916 = vpack.c.b16 %v740, %v732
    %v917 = vpack.c.b16 %v741, %v733
    %v918 = vpack.c.b16 %v742, %v734
    %v919 = vpack.c.b16 %v751, %v743
    %v920 = vpack.c.b16 %v752, %v744
    %v921 = vpack.c.b16 %v753, %v745
    %v922 = vpack.c.b16 %v754, %v746
    %v923 = vpack.c.b16 %v755, %v747
    %v924 = vpack.c.b16 %v756, %v748
    %v925 = vpack.c.b16 %v757, %v749
    %v926 = vpack.c.b16 %v758, %v750
    %v927 = vpack.c.b16 %v767, %v759
    %v928 = vpack.c.b16 %v768, %v760
    %v929 = vpack.c.b16 %v769, %v761
    %v930 = vpack.c.b16 %v770, %v762
    %v931 = vpack.c.b16 %v771, %v763
    %v932 = vpack.c.b16 %v772, %v764
    %v933 = vpack.c.b16 %v773, %v765
    %v934 = vpack.c.b16 %v774, %v766
    %v935 = vpack.c.b16 %v783, %v775
    %v936 = vpack.c.b16 %v784, %v776
    %v937 = vpack.c.b16 %v785, %v777
    %v938 = vpack.c.b16 %v786, %v778
    %v939 = vpack.c.b16 %v787, %v779
    %v940 = vpack.c.b16 %v788, %v780
    %v941 = vpack.c.b16 %v789, %v781
    %v942 = vpack.c.b16 %v790, %v782
    %v943 = vpack.c.b16 %v799, %v791
    %v944 = vpack.c.b16 %v800, %v792
    %v945 = vpack.c.b16 %v801, %v793
    %v946 = vpack.c.b16 %v802, %v794
    %v947 = vpack.c.b16 %v803, %v795
    %v948 = vpack.c.b16 %v804, %v796
    %v949 = vpack.c.b16 %v805, %v797
    %v950 = vpack.c.b16 %v806, %v798
    %v951 = vpack.c.b16 %v815, %v807
    %v952 = vpack.c.b16 %v816, %v808
    %v953 = vpack.c.b16 %v817, %v809
    %v954 = vpack.c.b16 %v818, %v810
    %v955 = vpack.c.b16 %v819, %v811
    %v956 = vpack.c.b16 %v820, %v812
    %v957 = vpack.c.b16 %v821, %v813
    %v958 = vpack.c.b16 %v822, %v814
    %v959 = vpack.c.b16 %v831, %v823
    %v960 = vpack.c.b16 %v832, %v824
    %v961 = vpack.c.b16 %v833, %v825
    %v962 = vpack.c.b16 %v834, %v826
    %v963 = vpack.c.b16 %v835, %v827
    %v964 = vpack.c.b16 %v836, %v828
    %v965 = vpack.c.b16 %v837, %v829
    %v966 = vpack.c.b16 %v838, %v830
    %v967 = vpack.c.b16 %v847, %v839
    %v968 = vpack.c.b16 %v848, %v840
    %v969 = vpack.c.b16 %v849, %v841
    %v970 = vpack.c.b16 %v850, %v842
    %v971 = vpack.c.b16 %v851, %v843
    %v972 = vpack.c.b16 %v852, %v844
    %v973 = vpack.c.b16 %v853, %v845
    %v974 = vpack.c.b16 %v854, %v846
    %v975 = vpack.c.b16 %v863, %v855
    %v976 = vpack.c.b16 %v864, %v856
    %v977 = vpack.c.b16 %v865, %v857
    %v978 = vpack.c.b16 %v866, %v858
    %v979 = vpack.c.b16 %v867, %v859
    %v980 = vpack.c.b16 %v868, %v860
    %v981 = vpack.c.b16 %v869, %v861
    %v982 = vpack.c.b16 %v870, %v862
    %v983 = vpack.c.b16 %v879, %v871
    %v984 = vpack.c.b16 %v880, %v872
    %v985 = vpack.c.b16 %v881, %v873
    %v986 = vpack.c.b16 %v882, %v874
    %v987 = vpack.c.b16 %v883, %v875
    %v988 = vpack.c.b16 %v884, %v876
    %v989 = vpack.c.b16 %v885, %v877
    %v990 = vpack.c.b16 %v886, %v878
    %v991 = vpack.c.b16 %v895, %v887
    %v992 = vpack.c.b16 %v896, %v888
    %v993 = vpack.c.b16 %v897, %v889
    %v994 = vpack.c.b16 %v898, %v890
    %v995 = vpack.c.b16 %v899, %v891
    %v996 = vpack.c.b16 %v900, %v892
    %v997 = vpack.c.b16 %v901, %v893
    %v998 = vpack.c.b16 %v902, %v894
    %vm1095 = vcmask 523264
    %v1097 = vsel %vm1095, %v476, 0
    %1099 = vmatprep.subr.bf16.mxu0 %v904
    %1100 = vmatpush1.bf16.msra.mxu0 %v903
    %1101 = vmatprep.subr.bf16.mxu0 %v912
    %1102 = vmatpush1.bf16.msra.mxu0 %v911
    %1103 = vmatprep.subr.bf16.mxu0 %v920
    %1104 = vmatpush1.bf16.msra.mxu0 %v919
    %1105 = vmatprep.subr.bf16.mxu0 %v928
    %1106 = vmatpush1.bf16.msra.mxu0 %v927
    %1107 = vmatprep.subr.bf16.mxu0 %v936
    %1108 = vmatpush1.bf16.msra.mxu0 %v935
    %1109 = vmatprep.subr.bf16.mxu0 %v944
    %1110 = vmatpush1.bf16.msra.mxu0 %v943
    %1111 = vmatprep.subr.bf16.mxu0 %v952
    %1112 = vmatpush1.bf16.msra.mxu0 %v951
    %1113 = vmatprep.subr.bf16.mxu0 %v960
    %1114 = vmatpush1.bf16.msra.mxu0 %v959
    %1115 = vmatprep.subr.bf16.mxu0 %v968
    %1116 = vmatpush1.bf16.msra.mxu0 %v967
    %1117 = vmatprep.subr.bf16.mxu0 %v976
    %1118 = vmatpush1.bf16.msra.mxu0 %v975
    %1119 = vmatprep.subr.bf16.mxu0 %v984
    %1120 = vmatpush1.bf16.msra.mxu0 %v983
    %1121 = vmatprep.subr.bf16.mxu0 %v992
    %1122 = vmatpush1.bf16.msra.mxu0 %v991
    %1123 = vmatprep.subr.bf16.mxu0 0
    %1124 = vmatpush1.bf16.msra.mxu0 0
    %1125 = vmatprep.subr.bf16.mxu0 0
    %1126 = vmatpush1.bf16.msra.mxu0 0
    %1127 = vmatprep.subr.bf16.mxu0 0
    %1128 = vmatpush1.bf16.msra.mxu0 0
    %1129 = vmatprep.subr.bf16.mxu0 0
    %1130 = vmatpush1.bf16.msra.mxu0 0
    %1131 = vmatprep.mubr.bf16.mxu0 %v1097
    %1132 = vmatmul.mubr.bf16.gmra.mrb[0].mxu0 %v475
    %v1133 = vpop.f32.mrb[0].mxu0
    %v1134 = vadd.f32 %v578, %v1133
    %v1135 = vpop.f32.mrb[0].mxu0
    %v1136 = vadd.f32 %v582, %v1135
    %v1137 = vpop.f32.mrb[0].mxu0
    %v1138 = vpop.f32.mrb[0].mxu0
    %1139 = vdwg.mxu0
    %1140 = vmatprep.subr.bf16.mxu0 %v906
    %1141 = vmatpush1.bf16.msra.mxu0 %v905
    %1142 = vmatprep.subr.bf16.mxu0 %v914
    %1143 = vmatpush1.bf16.msra.mxu0 %v913
    %1144 = vmatprep.subr.bf16.mxu0 %v922
    %1145 = vmatpush1.bf16.msra.mxu0 %v921
    %1146 = vmatprep.subr.bf16.mxu0 %v930
    %1147 = vmatpush1.bf16.msra.mxu0 %v929
    %1148 = vmatprep.subr.bf16.mxu0 %v938
    %1149 = vmatpush1.bf16.msra.mxu0 %v937
    %1150 = vmatprep.subr.bf16.mxu0 %v946
    %1151 = vmatpush1.bf16.msra.mxu0 %v945
    %1152 = vmatprep.subr.bf16.mxu0 %v954
    %1153 = vmatpush1.bf16.msra.mxu0 %v953
    %1154 = vmatprep.subr.bf16.mxu0 %v962
    %1155 = vmatpush1.bf16.msra.mxu0 %v961
    %1156 = vmatprep.subr.bf16.mxu0 %v970
    %1157 = vmatpush1.bf16.msra.mxu0 %v969
    %1158 = vmatprep.subr.bf16.mxu0 %v978
    %1159 = vmatpush1.bf16.msra.mxu0 %v977
    %1160 = vmatprep.subr.bf16.mxu0 %v986
    %1161 = vmatpush1.bf16.msra.mxu0 %v985
    %1162 = vmatprep.subr.bf16.mxu0 %v994
    %1163 = vmatpush1.bf16.msra.mxu0 %v993
    %1164 = vmatprep.subr.bf16.mxu0 0
    %1165 = vmatpush1.bf16.msra.mxu0 0
    %1166 = vmatprep.subr.bf16.mxu0 0
    %1167 = vmatpush1.bf16.msra.mxu0 0
    %1168 = vmatprep.subr.bf16.mxu0 0
    %1169 = vmatpush1.bf16.msra.mxu0 0
    %1170 = vmatprep.subr.bf16.mxu0 0
    %1171 = vmatpush1.bf16.msra.mxu0 0
    %1172 = vmatprep.mubr.bf16.mxu0 %v1097
    %1173 = vmatmul.mubr.bf16.gmra.mrb[0].mxu0 %v475
    %v1174 = vpop.f32.mrb[0].mxu0
    %v1175 = vadd.f32 %v586, %v1174
    %v1176 = vpop.f32.mrb[0].mxu0
    %v1177 = vadd.f32 %v590, %v1176
    %v1178 = vpop.f32.mrb[0].mxu0
    %v1179 = vpop.f32.mrb[0].mxu0
    %1180 = vdwg.mxu0
    %1181 = vmatprep.subr.bf16.mxu0 %v908
    %1182 = vmatpush1.bf16.msra.mxu0 %v907
    %1183 = vmatprep.subr.bf16.mxu0 %v916
    %1184 = vmatpush1.bf16.msra.mxu0 %v915
    %1185 = vmatprep.subr.bf16.mxu0 %v924
    %1186 = vmatpush1.bf16.msra.mxu0 %v923
    %1187 = vmatprep.subr.bf16.mxu0 %v932
    %1188 = vmatpush1.bf16.msra.mxu0 %v931
    %1189 = vmatprep.subr.bf16.mxu0 %v940
    %1190 = vmatpush1.bf16.msra.mxu0 %v939
    %1191 = vmatprep.subr.bf16.mxu0 %v948
    %1192 = vmatpush1.bf16.msra.mxu0 %v947
    %1193 = vmatprep.subr.bf16.mxu0 %v956
    %1194 = vmatpush1.bf16.msra.mxu0 %v955
    %1195 = vmatprep.subr.bf16.mxu0 %v964
    %1196 = vmatpush1.bf16.msra.mxu0 %v963
    %1197 = vmatprep.subr.bf16.mxu0 %v972
    %1198 = vmatpush1.bf16.msra.mxu0 %v971
    %1199 = vmatprep.subr.bf16.mxu0 %v980
    %1200 = vmatpush1.bf16.msra.mxu0 %v979
    %1201 = vmatprep.subr.bf16.mxu0 %v988
    %1202 = vmatpush1.bf16.msra.mxu0 %v987
    %1203 = vmatprep.subr.bf16.mxu0 %v996
    %1204 = vmatpush1.bf16.msra.mxu0 %v995
    %1205 = vmatprep.subr.bf16.mxu0 0
    %1206 = vmatpush1.bf16.msra.mxu0 0
    %1207 = vmatprep.subr.bf16.mxu0 0
    %1208 = vmatpush1.bf16.msra.mxu0 0
    %1209 = vmatprep.subr.bf16.mxu0 0
    %1210 = vmatpush1.bf16.msra.mxu0 0
    %1211 = vmatprep.subr.bf16.mxu0 0
    %1212 = vmatpush1.bf16.msra.mxu0 0
    %1213 = vmatprep.mubr.bf16.mxu0 %v1097
    %1214 = vmatmul.mubr.bf16.gmra.mrb[0].mxu0 %v475
    %v1215 = vpop.f32.mrb[0].mxu0
    %v1216 = vadd.f32 %v594, %v1215
    %v1217 = vpop.f32.mrb[0].mxu0
    %v1218 = vadd.f32 %v598, %v1217
    %v1219 = vpop.f32.mrb[0].mxu0
    %v1220 = vpop.f32.mrb[0].mxu0
    %1221 = vdwg.mxu0
    %1222 = vmatprep.subr.bf16.mxu0 %v910
    %1223 = vmatpush1.bf16.msra.mxu0 %v909
    %1224 = vmatprep.subr.bf16.mxu0 %v918
    %1225 = vmatpush1.bf16.msra.mxu0 %v917
    %1226 = vmatprep.subr.bf16.mxu0 %v926
    %1227 = vmatpush1.bf16.msra.mxu0 %v925
    %1228 = vmatprep.subr.bf16.mxu0 %v934
    %1229 = vmatpush1.bf16.msra.mxu0 %v933
    %1230 = vmatprep.subr.bf16.mxu0 %v942
    %1231 = vmatpush1.bf16.msra.mxu0 %v941
    %1232 = vmatprep.subr.bf16.mxu0 %v950
    %1233 = vmatpush1.bf16.msra.mxu0 %v949
    %1234 = vmatprep.subr.bf16.mxu0 %v958
    %1235 = vmatpush1.bf16.msra.mxu0 %v957
    %1236 = vmatprep.subr.bf16.mxu0 %v966
    %1237 = vmatpush1.bf16.msra.mxu0 %v965
    %1238 = vmatprep.subr.bf16.mxu0 %v974
    %1239 = vmatpush1.bf16.msra.mxu0 %v973
    %1240 = vmatprep.subr.bf16.mxu0 %v982
    %1241 = vmatpush1.bf16.msra.mxu0 %v981
    %1242 = vmatprep.subr.bf16.mxu0 %v990
    %1243 = vmatpush1.bf16.msra.mxu0 %v989
    %1244 = vmatprep.subr.bf16.mxu0 %v998
    %1245 = vmatpush1.bf16.msra.mxu0 %v997
    %1246 = vmatprep.subr.bf16.mxu0 0
    %1247 = vmatpush1.bf16.msra.mxu0 0
    %1248 = vmatprep.subr.bf16.mxu0 0
    %1249 = vmatpush1.bf16.msra.mxu0 0
    %1250 = vmatprep.subr.bf16.mxu0 0
    %1251 = vmatpush1.bf16.msra.mxu0 0
    %1252 = vmatprep.subr.bf16.mxu0 0
    %1253 = vmatpush1.bf16.msra.mxu0 0
    %1254 = vmatprep.mubr.bf16.mxu0 %v1097
    %1255 = vmatmul.mubr.bf16.gmra.mrb[0].mxu0 %v475
    %v1256 = vpop.f32.mrb[0].mxu0
    %v1257 = vadd.f32 %v602, %v1256
    %v1258 = vpop.f32.mrb[0].mxu0
    %v1259 = vadd.f32 %v606, %v1258
    %v1260 = vpop.f32.mrb[0].mxu0
    %v1261 = vpop.f32.mrb[0].mxu0
    %1262 = vdwg.mxu0
    %v1263 = vpack.c.bf16 %v1134, %v1134
    %v1264 = vpack.c.bf16 %v1136, %v1136
    %v1265 = vpack.c.bf16 %v1175, %v1175
    %v1266 = vpack.c.bf16 %v1177, %v1177
    %v1267 = vpack.c.bf16 %v1216, %v1216
    %v1268 = vpack.c.bf16 %v1218, %v1218
    %v1269 = vpack.c.bf16 %v1257, %v1257
    %v1270 = vpack.c.bf16 %v1259, %v1259
    %v1271 = vld [vmem:[%s7] sm:$0xff]
    %v1272 = vld [vmem:[%s7 + $0x8] sm:$0xff]
    %v1273 = vld [vmem:[%s7 + $0x10] sm:$0xff]
    %v1274 = vld [vmem:[%s7 + $0x18] sm:$0xff]
    %v1275 = vld [vmem:[%s7 + $0x20] sm:$0xff]
    %v1276 = vld [vmem:[%s7 + $0x28] sm:$0xff]
    %v1277 = vld [vmem:[%s7 + $0x30] sm:$0xff]
    %v1278 = vld [vmem:[%s7 + $0x38] sm:$0xff]
    %v1279 = vld [vmem:[%s7 + $0x40] sm:$0xff]
    %v1280 = vld [vmem:[%s7 + $0x48] sm:$0xff]
    %v1281 = vld [vmem:[%s7 + $0x50] sm:$0xff]
    %v1282 = vld [vmem:[%s7 + $0x58] sm:$0xff]
    %v1283 = vld [vmem:[%s7 + $0x60] sm:$0xff]
    %v1284 = vld [vmem:[%s7 + $0x68] sm:$0xff]
    %v1285 = vld [vmem:[%s7 + $0x70] sm:$0xff]
    %v1286 = vld [vmem:[%s7 + $0x78] sm:$0xff]
    %v1287 = vld [vmem:[%s7 + $0x80] sm:$0xff]
    %v1288 = vld [vmem:[%s7 + $0x88] sm:$0xff]
    %v1289 = vld [vmem:[%s7 + $0x90] sm:$0xff]
    %v1290 = vld [vmem:[%s7 + $0x98] sm:$0xff]
    %v1291 = vld [vmem:[%s7 + $0xa0] sm:$0xff]
    %v1292 = vld [vmem:[%s7 + $0xa8] sm:$0xff]
    %v1293 = vld [vmem:[%s7 + $0xb0] sm:$0xff]
    %v1294 = vld [vmem:[%s7 + $0xb8] sm:$0xff]
    %v1295 = vld [vmem:[%s7 + $0xc0] sm:$0xff]
    %v1296 = vld [vmem:[%s7 + $0xc8] sm:$0xff]
    %v1297 = vld [vmem:[%s7 + $0xd0] sm:$0xff]
    %v1298 = vld [vmem:[%s7 + $0xd8] sm:$0xff]
    %v1299 = vld [vmem:[%s7 + $0xe0] sm:$0xff]
    %v1300 = vld [vmem:[%s7 + $0xe8] sm:$0xff]
    %v1301 = vld [vmem:[%s7 + $0xf0] sm:$0xff]
    %v1302 = vld [vmem:[%s7 + $0xf8] sm:$0xff]
    %v1303 = vld [vmem:[%s7 + $0x100] sm:$0xff]
    %v1304 = vld [vmem:[%s7 + $0x108] sm:$0xff]
    %v1305 = vld [vmem:[%s7 + $0x110] sm:$0xff]
    %v1306 = vld [vmem:[%s7 + $0x118] sm:$0xff]
    %v1307 = vld [vmem:[%s7 + $0x120] sm:$0xff]
    %v1308 = vld [vmem:[%s7 + $0x128] sm:$0xff]
    %v1309 = vld [vmem:[%s7 + $0x130] sm:$0xff]
    %v1310 = vld [vmem:[%s7 + $0x138] sm:$0xff]
    %v1311 = vld [vmem:[%s7 + $0x140] sm:$0xff]
    %v1312 = vld [vmem:[%s7 + $0x148] sm:$0xff]
    %v1313 = vld [vmem:[%s7 + $0x150] sm:$0xff]
    %v1314 = vld [vmem:[%s7 + $0x158] sm:$0xff]
    %v1315 = vld [vmem:[%s7 + $0x160] sm:$0xff]
    %v1316 = vld [vmem:[%s7 + $0x168] sm:$0xff]
    %v1317 = vld [vmem:[%s7 + $0x170] sm:$0xff]
    %v1318 = vld [vmem:[%s7 + $0x178] sm:$0xff]
    %v1319 = vld [vmem:[%s7 + $0x180] sm:$0xff]
    %v1320 = vld [vmem:[%s7 + $0x188] sm:$0xff]
    %v1321 = vld [vmem:[%s7 + $0x190] sm:$0xff]
    %v1322 = vld [vmem:[%s7 + $0x198] sm:$0xff]
    %v1323 = vld [vmem:[%s7 + $0x1a0] sm:$0xff]
    %v1324 = vld [vmem:[%s7 + $0x1a8] sm:$0xff]
    %v1325 = vld [vmem:[%s7 + $0x1b0] sm:$0xff]
    %v1326 = vld [vmem:[%s7 + $0x1b8] sm:$0xff]
    %v1327 = vld [vmem:[%s7 + $0x1c0] sm:$0xff]
    %v1328 = vld [vmem:[%s7 + $0x1c8] sm:$0xff]
    %v1329 = vld [vmem:[%s7 + $0x1d0] sm:$0xff]
    %v1330 = vld [vmem:[%s7 + $0x1d8] sm:$0xff]
    %v1331 = vld [vmem:[%s7 + $0x1e0] sm:$0xff]
    %v1332 = vld [vmem:[%s7 + $0x1e8] sm:$0xff]
    %v1333 = vld [vmem:[%s7 + $0x1f0] sm:$0xff]
    %v1334 = vld [vmem:[%s7 + $0x1f8] sm:$0xff]
    %v1335 = vld [vmem:[%s7 + $0x200] sm:$0xff]
    %v1336 = vld [vmem:[%s7 + $0x208] sm:$0xff]
    %v1337 = vld [vmem:[%s7 + $0x210] sm:$0xff]
    %v1338 = vld [vmem:[%s7 + $0x218] sm:$0xff]
    %v1339 = vld [vmem:[%s7 + $0x220] sm:$0xff]
    %v1340 = vld [vmem:[%s7 + $0x228] sm:$0xff]
    %v1341 = vld [vmem:[%s7 + $0x230] sm:$0xff]
    %v1342 = vld [vmem:[%s7 + $0x238] sm:$0xff]
    %v1343 = vld [vmem:[%s7 + $0x240] sm:$0xff]
    %v1344 = vld [vmem:[%s7 + $0x248] sm:$0xff]
    %v1345 = vld [vmem:[%s7 + $0x250] sm:$0xff]
    %v1346 = vld [vmem:[%s7 + $0x258] sm:$0xff]
    %v1347 = vld [vmem:[%s7 + $0x260] sm:$0xff]
    %v1348 = vld [vmem:[%s7 + $0x268] sm:$0xff]
    %v1349 = vld [vmem:[%s7 + $0x270] sm:$0xff]
    %v1350 = vld [vmem:[%s7 + $0x278] sm:$0xff]
    %v1351 = vld [vmem:[%s7 + $0x280] sm:$0xff]
    %v1352 = vld [vmem:[%s7 + $0x288] sm:$0xff]
    %v1353 = vld [vmem:[%s7 + $0x290] sm:$0xff]
    %v1354 = vld [vmem:[%s7 + $0x298] sm:$0xff]
    %v1355 = vld [vmem:[%s7 + $0x2a0] sm:$0xff]
    %v1356 = vld [vmem:[%s7 + $0x2a8] sm:$0xff]
    %v1357 = vld [vmem:[%s7 + $0x2b0] sm:$0xff]
    %v1358 = vld [vmem:[%s7 + $0x2b8] sm:$0xff]
    %v1359 = vld [vmem:[%s7 + $0x2c0] sm:$0xff]
    %v1360 = vld [vmem:[%s7 + $0x2c8] sm:$0xff]
    %v1361 = vld [vmem:[%s7 + $0x2d0] sm:$0xff]
    %v1362 = vld [vmem:[%s7 + $0x2d8] sm:$0xff]
    %v1363 = vld [vmem:[%s7 + $0x2e0] sm:$0xff]
    %v1364 = vld [vmem:[%s7 + $0x2e8] sm:$0xff]
    %v1365 = vld [vmem:[%s7 + $0x2f0] sm:$0xff]
    %v1366 = vld [vmem:[%s7 + $0x2f8] sm:$0xff]
    %v1367 = vld [vmem:[%s7 + $0x300] sm:$0xff]
    %v1368 = vld [vmem:[%s7 + $0x308] sm:$0xff]
    %v1369 = vld [vmem:[%s7 + $0x310] sm:$0xff]
    %v1370 = vld [vmem:[%s7 + $0x318] sm:$0xff]
    %v1371 = vld [vmem:[%s7 + $0x320] sm:$0xff]
    %v1372 = vld [vmem:[%s7 + $0x328] sm:$0xff]
    %v1373 = vld [vmem:[%s7 + $0x330] sm:$0xff]
    %v1374 = vld [vmem:[%s7 + $0x338] sm:$0xff]
    %v1375 = vld [vmem:[%s7 + $0x340] sm:$0xff]
    %v1376 = vld [vmem:[%s7 + $0x348] sm:$0xff]
    %v1377 = vld [vmem:[%s7 + $0x350] sm:$0xff]
    %v1378 = vld [vmem:[%s7 + $0x358] sm:$0xff]
    %v1379 = vld [vmem:[%s7 + $0x360] sm:$0xff]
    %v1380 = vld [vmem:[%s7 + $0x368] sm:$0xff]
    %v1381 = vld [vmem:[%s7 + $0x370] sm:$0xff]
    %v1382 = vld [vmem:[%s7 + $0x378] sm:$0xff]
    %v1383 = vld [vmem:[%s7 + $0x380] sm:$0xff]
    %v1384 = vld [vmem:[%s7 + $0x388] sm:$0xff]
    %v1385 = vld [vmem:[%s7 + $0x390] sm:$0xff]
    %v1386 = vld [vmem:[%s7 + $0x398] sm:$0xff]
    %v1387 = vld [vmem:[%s7 + $0x3a0] sm:$0xff]
    %v1388 = vld [vmem:[%s7 + $0x3a8] sm:$0xff]
    %v1389 = vld [vmem:[%s7 + $0x3b0] sm:$0xff]
    %v1390 = vld [vmem:[%s7 + $0x3b8] sm:$0xff]
    %v1391 = vld [vmem:[%s7 + $0x3c0] sm:$0xff]
    %v1392 = vld [vmem:[%s7 + $0x3c8] sm:$0xff]
    %v1393 = vld [vmem:[%s7 + $0x3d0] sm:$0xff]
    %v1394 = vld [vmem:[%s7 + $0x3d8] sm:$0xff]
    %v1395 = vld [vmem:[%s7 + $0x3e0] sm:$0xff]
    %v1396 = vld [vmem:[%s7 + $0x3e8] sm:$0xff]
    %v1397 = vld [vmem:[%s7 + $0x3f0] sm:$0xff]
    %v1398 = vld [vmem:[%s7 + $0x3f8] sm:$0xff]
    %v1399 = vld [vmem:[%s8] sm:$0x3]
    %v1401 = vlaneseq
    %v1402 = vshrl.u32 %v1401, 7
    %v1403 = vsub.s32 0, %v1402
    %v1404 = vrot.slane %v1399, %v1403
    %v1405 = vlaneseq
    %v1406 = vshrl.u32 %v1405, 7
    %v1407 = vsub.s32 1, %v1406
    %v1408 = vrot.slane %v1399, %v1407
    %v1539 = vunpack.c.l.b16 %v1271
    %v1540 = vunpack.c.h.b16 %v1271
    %v1541 = vunpack.c.l.b16 %v1272
    %v1542 = vunpack.c.h.b16 %v1272
    %v1543 = vunpack.c.l.b16 %v1273
    %v1544 = vunpack.c.h.b16 %v1273
    %v1545 = vunpack.c.l.b16 %v1274
    %v1546 = vunpack.c.h.b16 %v1274
    %v1547 = vunpack.c.l.b16 %v1275
    %v1548 = vunpack.c.h.b16 %v1275
    %v1549 = vunpack.c.l.b16 %v1276
    %v1550 = vunpack.c.h.b16 %v1276
    %v1551 = vunpack.c.l.b16 %v1277
    %v1552 = vunpack.c.h.b16 %v1277
    %v1553 = vunpack.c.l.b16 %v1278
    %v1554 = vunpack.c.h.b16 %v1278
    %v1555 = vunpack.c.l.b16 %v1279
    %v1556 = vunpack.c.h.b16 %v1279
    %v1557 = vunpack.c.l.b16 %v1280
    %v1558 = vunpack.c.h.b16 %v1280
    %v1559 = vunpack.c.l.b16 %v1281
    %v1560 = vunpack.c.h.b16 %v1281
    %v1561 = vunpack.c.l.b16 %v1282
    %v1562 = vunpack.c.h.b16 %v1282
    %v1563 = vunpack.c.l.b16 %v1283
    %v1564 = vunpack.c.h.b16 %v1283
    %v1565 = vunpack.c.l.b16 %v1284
    %v1566 = vunpack.c.h.b16 %v1284
    %v1567 = vunpack.c.l.b16 %v1285
    %v1568 = vunpack.c.h.b16 %v1285
    %v1569 = vunpack.c.l.b16 %v1286
    %v1570 = vunpack.c.h.b16 %v1286
    %v1571 = vunpack.c.l.b16 %v1287
    %v1572 = vunpack.c.h.b16 %v1287
    %v1573 = vunpack.c.l.b16 %v1288
    %v1574 = vunpack.c.h.b16 %v1288
    %v1575 = vunpack.c.l.b16 %v1289
    %v1576 = vunpack.c.h.b16 %v1289
    %v1577 = vunpack.c.l.b16 %v1290
    %v1578 = vunpack.c.h.b16 %v1290
    %v1579 = vunpack.c.l.b16 %v1291
    %v1580 = vunpack.c.h.b16 %v1291
    %v1581 = vunpack.c.l.b16 %v1292
    %v1582 = vunpack.c.h.b16 %v1292
    %v1583 = vunpack.c.l.b16 %v1293
    %v1584 = vunpack.c.h.b16 %v1293
    %v1585 = vunpack.c.l.b16 %v1294
    %v1586 = vunpack.c.h.b16 %v1294
    %v1587 = vunpack.c.l.b16 %v1295
    %v1588 = vunpack.c.h.b16 %v1295
    %v1589 = vunpack.c.l.b16 %v1296
    %v1590 = vunpack.c.h.b16 %v1296
    %v1591 = vunpack.c.l.b16 %v1297
    %v1592 = vunpack.c.h.b16 %v1297
    %v1593 = vunpack.c.l.b16 %v1298
    %v1594 = vunpack.c.h.b16 %v1298
    %v1595 = vunpack.c.l.b16 %v1299
    %v1596 = vunpack.c.h.b16 %v1299
    %v1597 = vunpack.c.l.b16 %v1300
    %v1598 = vunpack.c.h.b16 %v1300
    %v1599 = vunpack.c.l.b16 %v1301
    %v1600 = vunpack.c.h.b16 %v1301
    %v1601 = vunpack.c.l.b16 %v1302
    %v1602 = vunpack.c.h.b16 %v1302
    %v1603 = vunpack.c.l.b16 %v1303
    %v1604 = vunpack.c.h.b16 %v1303
    %v1605 = vunpack.c.l.b16 %v1304
    %v1606 = vunpack.c.h.b16 %v1304
    %v1607 = vunpack.c.l.b16 %v1305
    %v1608 = vunpack.c.h.b16 %v1305
    %v1609 = vunpack.c.l.b16 %v1306
    %v1610 = vunpack.c.h.b16 %v1306
    %v1611 = vunpack.c.l.b16 %v1307
    %v1612 = vunpack.c.h.b16 %v1307
    %v1613 = vunpack.c.l.b16 %v1308
    %v1614 = vunpack.c.h.b16 %v1308
    %v1615 = vunpack.c.l.b16 %v1309
    %v1616 = vunpack.c.h.b16 %v1309
    %v1617 = vunpack.c.l.b16 %v1310
    %v1618 = vunpack.c.h.b16 %v1310
    %v1619 = vunpack.c.l.b16 %v1311
    %v1620 = vunpack.c.h.b16 %v1311
    %v1621 = vunpack.c.l.b16 %v1312
    %v1622 = vunpack.c.h.b16 %v1312
    %v1623 = vunpack.c.l.b16 %v1313
    %v1624 = vunpack.c.h.b16 %v1313
    %v1625 = vunpack.c.l.b16 %v1314
    %v1626 = vunpack.c.h.b16 %v1314
    %v1627 = vunpack.c.l.b16 %v1315
    %v1628 = vunpack.c.h.b16 %v1315
    %v1629 = vunpack.c.l.b16 %v1316
    %v1630 = vunpack.c.h.b16 %v1316
    %v1631 = vunpack.c.l.b16 %v1317
    %v1632 = vunpack.c.h.b16 %v1317
    %v1633 = vunpack.c.l.b16 %v1318
    %v1634 = vunpack.c.h.b16 %v1318
    %v1635 = vunpack.c.l.b16 %v1319
    %v1636 = vunpack.c.h.b16 %v1319
    %v1637 = vunpack.c.l.b16 %v1320
    %v1638 = vunpack.c.h.b16 %v1320
    %v1639 = vunpack.c.l.b16 %v1321
    %v1640 = vunpack.c.h.b16 %v1321
    %v1641 = vunpack.c.l.b16 %v1322
    %v1642 = vunpack.c.h.b16 %v1322
    %v1643 = vunpack.c.l.b16 %v1323
    %v1644 = vunpack.c.h.b16 %v1323
    %v1645 = vunpack.c.l.b16 %v1324
    %v1646 = vunpack.c.h.b16 %v1324
    %v1647 = vunpack.c.l.b16 %v1325
    %v1648 = vunpack.c.h.b16 %v1325
    %v1649 = vunpack.c.l.b16 %v1326
    %v1650 = vunpack.c.h.b16 %v1326
    %v1651 = vunpack.c.l.b16 %v1327
    %v1652 = vunpack.c.h.b16 %v1327
    %v1653 = vunpack.c.l.b16 %v1328
    %v1654 = vunpack.c.h.b16 %v1328
    %v1655 = vunpack.c.l.b16 %v1329
    %v1656 = vunpack.c.h.b16 %v1329
    %v1657 = vunpack.c.l.b16 %v1330
    %v1658 = vunpack.c.h.b16 %v1330
    %v1659 = vunpack.c.l.b16 %v1331
    %v1660 = vunpack.c.h.b16 %v1331
    %v1661 = vunpack.c.l.b16 %v1332
    %v1662 = vunpack.c.h.b16 %v1332
    %v1663 = vunpack.c.l.b16 %v1333
    %v1664 = vunpack.c.h.b16 %v1333
    %v1665 = vunpack.c.l.b16 %v1334
    %v1666 = vunpack.c.h.b16 %v1334
    %v1667 = vunpack.c.l.b16 %v1335
    %v1668 = vunpack.c.h.b16 %v1335
    %v1669 = vunpack.c.l.b16 %v1336
    %v1670 = vunpack.c.h.b16 %v1336
    %v1671 = vunpack.c.l.b16 %v1337
    %v1672 = vunpack.c.h.b16 %v1337
    %v1673 = vunpack.c.l.b16 %v1338
    %v1674 = vunpack.c.h.b16 %v1338
    %v1675 = vunpack.c.l.b16 %v1339
    %v1676 = vunpack.c.h.b16 %v1339
    %v1677 = vunpack.c.l.b16 %v1340
    %v1678 = vunpack.c.h.b16 %v1340
    %v1679 = vunpack.c.l.b16 %v1341
    %v1680 = vunpack.c.h.b16 %v1341
    %v1681 = vunpack.c.l.b16 %v1342
    %v1682 = vunpack.c.h.b16 %v1342
    %v1683 = vunpack.c.l.b16 %v1343
    %v1684 = vunpack.c.h.b16 %v1343
    %v1685 = vunpack.c.l.b16 %v1344
    %v1686 = vunpack.c.h.b16 %v1344
    %v1687 = vunpack.c.l.b16 %v1345
    %v1688 = vunpack.c.h.b16 %v1345
    %v1689 = vunpack.c.l.b16 %v1346
    %v1690 = vunpack.c.h.b16 %v1346
    %v1691 = vunpack.c.l.b16 %v1347
    %v1692 = vunpack.c.h.b16 %v1347
    %v1693 = vunpack.c.l.b16 %v1348
    %v1694 = vunpack.c.h.b16 %v1348
    %v1695 = vunpack.c.l.b16 %v1349
    %v1696 = vunpack.c.h.b16 %v1349
    %v1697 = vunpack.c.l.b16 %v1350
    %v1698 = vunpack.c.h.b16 %v1350
    %v1699 = vunpack.c.l.b16 %v1351
    %v1700 = vunpack.c.h.b16 %v1351
    %v1701 = vunpack.c.l.b16 %v1352
    %v1702 = vunpack.c.h.b16 %v1352
    %v1703 = vunpack.c.l.b16 %v1353
    %v1704 = vunpack.c.h.b16 %v1353
    %v1705 = vunpack.c.l.b16 %v1354
    %v1706 = vunpack.c.h.b16 %v1354
    %v1707 = vunpack.c.l.b16 %v1355
    %v1708 = vunpack.c.h.b16 %v1355
    %v1709 = vunpack.c.l.b16 %v1356
    %v1710 = vunpack.c.h.b16 %v1356
    %v1711 = vunpack.c.l.b16 %v1357
    %v1712 = vunpack.c.h.b16 %v1357
    %v1713 = vunpack.c.l.b16 %v1358
    %v1714 = vunpack.c.h.b16 %v1358
    %v1715 = vunpack.c.l.b16 %v1359
    %v1716 = vunpack.c.h.b16 %v1359
    %v1717 = vunpack.c.l.b16 %v1360
    %v1718 = vunpack.c.h.b16 %v1360
    %v1719 = vunpack.c.l.b16 %v1361
    %v1720 = vunpack.c.h.b16 %v1361
    %v1721 = vunpack.c.l.b16 %v1362
    %v1722 = vunpack.c.h.b16 %v1362
    %v1723 = vunpack.c.l.b16 %v1363
    %v1724 = vunpack.c.h.b16 %v1363
    %v1725 = vunpack.c.l.b16 %v1364
    %v1726 = vunpack.c.h.b16 %v1364
    %v1727 = vunpack.c.l.b16 %v1365
    %v1728 = vunpack.c.h.b16 %v1365
    %v1729 = vunpack.c.l.b16 %v1366
    %v1730 = vunpack.c.h.b16 %v1366
    %v1731 = vunpack.c.l.b16 %v1367
    %v1732 = vunpack.c.h.b16 %v1367
    %v1733 = vunpack.c.l.b16 %v1368
    %v1734 = vunpack.c.h.b16 %v1368
    %v1735 = vunpack.c.l.b16 %v1369
    %v1736 = vunpack.c.h.b16 %v1369
    %v1737 = vunpack.c.l.b16 %v1370
    %v1738 = vunpack.c.h.b16 %v1370
    %v1739 = vunpack.c.l.b16 %v1371
    %v1740 = vunpack.c.h.b16 %v1371
    %v1741 = vunpack.c.l.b16 %v1372
    %v1742 = vunpack.c.h.b16 %v1372
    %v1743 = vunpack.c.l.b16 %v1373
    %v1744 = vunpack.c.h.b16 %v1373
    %v1745 = vunpack.c.l.b16 %v1374
    %v1746 = vunpack.c.h.b16 %v1374
    %v1747 = vunpack.c.l.b16 %v1375
    %v1748 = vunpack.c.h.b16 %v1375
    %v1749 = vunpack.c.l.b16 %v1376
    %v1750 = vunpack.c.h.b16 %v1376
    %v1751 = vunpack.c.l.b16 %v1377
    %v1752 = vunpack.c.h.b16 %v1377
    %v1753 = vunpack.c.l.b16 %v1378
    %v1754 = vunpack.c.h.b16 %v1378
    %v1755 = vunpack.c.l.b16 %v1379
    %v1756 = vunpack.c.h.b16 %v1379
    %v1757 = vunpack.c.l.b16 %v1380
    %v1758 = vunpack.c.h.b16 %v1380
    %v1759 = vunpack.c.l.b16 %v1381
    %v1760 = vunpack.c.h.b16 %v1381
    %v1761 = vunpack.c.l.b16 %v1382
    %v1762 = vunpack.c.h.b16 %v1382
    %v1763 = vunpack.c.l.b16 %v1383
    %v1764 = vunpack.c.h.b16 %v1383
    %v1765 = vunpack.c.l.b16 %v1384
    %v1766 = vunpack.c.h.b16 %v1384
    %v1767 = vunpack.c.l.b16 %v1385
    %v1768 = vunpack.c.h.b16 %v1385
    %v1769 = vunpack.c.l.b16 %v1386
    %v1770 = vunpack.c.h.b16 %v1386
    %v1771 = vunpack.c.l.b16 %v1387
    %v1772 = vunpack.c.h.b16 %v1387
    %v1773 = vunpack.c.l.b16 %v1388
    %v1774 = vunpack.c.h.b16 %v1388
    %v1775 = vunpack.c.l.b16 %v1389
    %v1776 = vunpack.c.h.b16 %v1389
    %v1777 = vunpack.c.l.b16 %v1390
    %v1778 = vunpack.c.h.b16 %v1390
    %v1779 = vunpack.c.l.b16 %v1391
    %v1780 = vunpack.c.h.b16 %v1391
    %v1781 = vunpack.c.l.b16 %v1392
    %v1782 = vunpack.c.h.b16 %v1392
    %v1783 = vunpack.c.l.b16 %v1393
    %v1784 = vunpack.c.h.b16 %v1393
    %v1785 = vunpack.c.l.b16 %v1394
    %v1786 = vunpack.c.h.b16 %v1394
    %v1787 = vunpack.c.l.b16 %v1395
    %v1788 = vunpack.c.h.b16 %v1395
    %v1789 = vunpack.c.l.b16 %v1396
    %v1790 = vunpack.c.h.b16 %v1396
    %v1791 = vunpack.c.l.b16 %v1397
    %v1792 = vunpack.c.h.b16 %v1397
    %v1793 = vunpack.c.l.b16 %v1398
    %v1794 = vunpack.c.h.b16 %v1398
    %v1795 = vpack.c.b16 %v1541, %v1539
    %v1796 = vpack.c.b16 %v1542, %v1540
    %v1797 = vpack.c.b16 %v1545, %v1543
    %v1798 = vpack.c.b16 %v1546, %v1544
    %v1799 = vpack.c.b16 %v1549, %v1547
    %v1800 = vpack.c.b16 %v1550, %v1548
    %v1801 = vpack.c.b16 %v1553, %v1551
    %v1802 = vpack.c.b16 %v1554, %v1552
    %v1803 = vpack.c.b16 %v1557, %v1555
    %v1804 = vpack.c.b16 %v1558, %v1556
    %v1805 = vpack.c.b16 %v1561, %v1559
    %v1806 = vpack.c.b16 %v1562, %v1560
    %v1807 = vpack.c.b16 %v1565, %v1563
    %v1808 = vpack.c.b16 %v1566, %v1564
    %v1809 = vpack.c.b16 %v1569, %v1567
    %v1810 = vpack.c.b16 %v1570, %v1568
    %v1811 = vpack.c.b16 %v1573, %v1571
    %v1812 = vpack.c.b16 %v1574, %v1572
    %v1813 = vpack.c.b16 %v1577, %v1575
    %v1814 = vpack.c.b16 %v1578, %v1576
    %v1815 = vpack.c.b16 %v1581, %v1579
    %v1816 = vpack.c.b16 %v1582, %v1580
    %v1817 = vpack.c.b16 %v1585, %v1583
    %v1818 = vpack.c.b16 %v1586, %v1584
    %v1819 = vpack.c.b16 %v1589, %v1587
    %v1820 = vpack.c.b16 %v1590, %v1588
    %v1821 = vpack.c.b16 %v1593, %v1591
    %v1822 = vpack.c.b16 %v1594, %v1592
    %v1823 = vpack.c.b16 %v1597, %v1595
    %v1824 = vpack.c.b16 %v1598, %v1596
    %v1825 = vpack.c.b16 %v1601, %v1599
    %v1826 = vpack.c.b16 %v1602, %v1600
    %v1827 = vpack.c.b16 %v1605, %v1603
    %v1828 = vpack.c.b16 %v1606, %v1604
    %v1829 = vpack.c.b16 %v1609, %v1607
    %v1830 = vpack.c.b16 %v1610, %v1608
    %v1831 = vpack.c.b16 %v1613, %v1611
    %v1832 = vpack.c.b16 %v1614, %v1612
    %v1833 = vpack.c.b16 %v1617, %v1615
    %v1834 = vpack.c.b16 %v1618, %v1616
    %v1835 = vpack.c.b16 %v1621, %v1619
    %v1836 = vpack.c.b16 %v1622, %v1620
    %v1837 = vpack.c.b16 %v1625, %v1623
    %v1838 = vpack.c.b16 %v1626, %v1624
    %v1839 = vpack.c.b16 %v1629, %v1627
    %v1840 = vpack.c.b16 %v1630, %v1628
    %v1841 = vpack.c.b16 %v1633, %v1631
    %v1842 = vpack.c.b16 %v1634, %v1632
    %v1843 = vpack.c.b16 %v1637, %v1635
    %v1844 = vpack.c.b16 %v1638, %v1636
    %v1845 = vpack.c.b16 %v1641, %v1639
    %v1846 = vpack.c.b16 %v1642, %v1640
    %v1847 = vpack.c.b16 %v1645, %v1643
    %v1848 = vpack.c.b16 %v1646, %v1644
    %v1849 = vpack.c.b16 %v1649, %v1647
    %v1850 = vpack.c.b16 %v1650, %v1648
    %v1851 = vpack.c.b16 %v1653, %v1651
    %v1852 = vpack.c.b16 %v1654, %v1652
    %v1853 = vpack.c.b16 %v1657, %v1655
    %v1854 = vpack.c.b16 %v1658, %v1656
    %v1855 = vpack.c.b16 %v1661, %v1659
    %v1856 = vpack.c.b16 %v1662, %v1660
    %v1857 = vpack.c.b16 %v1665, %v1663
    %v1858 = vpack.c.b16 %v1666, %v1664
    %v1859 = vpack.c.b16 %v1669, %v1667
    %v1860 = vpack.c.b16 %v1670, %v1668
    %v1861 = vpack.c.b16 %v1673, %v1671
    %v1862 = vpack.c.b16 %v1674, %v1672
    %v1863 = vpack.c.b16 %v1677, %v1675
    %v1864 = vpack.c.b16 %v1678, %v1676
    %v1865 = vpack.c.b16 %v1681, %v1679
    %v1866 = vpack.c.b16 %v1682, %v1680
    %v1867 = vpack.c.b16 %v1685, %v1683
    %v1868 = vpack.c.b16 %v1686, %v1684
    %v1869 = vpack.c.b16 %v1689, %v1687
    %v1870 = vpack.c.b16 %v1690, %v1688
    %v1871 = vpack.c.b16 %v1693, %v1691
    %v1872 = vpack.c.b16 %v1694, %v1692
    %v1873 = vpack.c.b16 %v1697, %v1695
    %v1874 = vpack.c.b16 %v1698, %v1696
    %v1875 = vpack.c.b16 %v1701, %v1699
    %v1876 = vpack.c.b16 %v1702, %v1700
    %v1877 = vpack.c.b16 %v1705, %v1703
    %v1878 = vpack.c.b16 %v1706, %v1704
    %v1879 = vpack.c.b16 %v1709, %v1707
    %v1880 = vpack.c.b16 %v1710, %v1708
    %v1881 = vpack.c.b16 %v1713, %v1711
    %v1882 = vpack.c.b16 %v1714, %v1712
    %v1883 = vpack.c.b16 %v1717, %v1715
    %v1884 = vpack.c.b16 %v1718, %v1716
    %v1885 = vpack.c.b16 %v1721, %v1719
    %v1886 = vpack.c.b16 %v1722, %v1720
    %v1887 = vpack.c.b16 %v1725, %v1723
    %v1888 = vpack.c.b16 %v1726, %v1724
    %v1889 = vpack.c.b16 %v1729, %v1727
    %v1890 = vpack.c.b16 %v1730, %v1728
    %v1891 = vpack.c.b16 %v1733, %v1731
    %v1892 = vpack.c.b16 %v1734, %v1732
    %v1893 = vpack.c.b16 %v1737, %v1735
    %v1894 = vpack.c.b16 %v1738, %v1736
    %v1895 = vpack.c.b16 %v1741, %v1739
    %v1896 = vpack.c.b16 %v1742, %v1740
    %v1897 = vpack.c.b16 %v1745, %v1743
    %v1898 = vpack.c.b16 %v1746, %v1744
    %v1899 = vpack.c.b16 %v1749, %v1747
    %v1900 = vpack.c.b16 %v1750, %v1748
    %v1901 = vpack.c.b16 %v1753, %v1751
    %v1902 = vpack.c.b16 %v1754, %v1752
    %v1903 = vpack.c.b16 %v1757, %v1755
    %v1904 = vpack.c.b16 %v1758, %v1756
    %v1905 = vpack.c.b16 %v1761, %v1759
    %v1906 = vpack.c.b16 %v1762, %v1760
    %v1907 = vpack.c.b16 %v1765, %v1763
    %v1908 = vpack.c.b16 %v1766, %v1764
    %v1909 = vpack.c.b16 %v1769, %v1767
    %v1910 = vpack.c.b16 %v1770, %v1768
    %v1911 = vpack.c.b16 %v1773, %v1771
    %v1912 = vpack.c.b16 %v1774, %v1772
    %v1913 = vpack.c.b16 %v1777, %v1775
    %v1914 = vpack.c.b16 %v1778, %v1776
    %v1915 = vpack.c.b16 %v1781, %v1779
    %v1916 = vpack.c.b16 %v1782, %v1780
    %v1917 = vpack.c.b16 %v1785, %v1783
    %v1918 = vpack.c.b16 %v1786, %v1784
    %v1919 = vpack.c.b16 %v1789, %v1787
    %v1920 = vpack.c.b16 %v1790, %v1788
    %v1921 = vpack.c.b16 %v1793, %v1791
    %v1922 = vpack.c.b16 %v1794, %v1792
    %2051 = vmatprep.subr.bf16.mxu0 %v1796
    %2052 = vmatpush1.bf16.msra.mxu0 %v1795
    %2053 = vmatprep.subr.bf16.mxu0 %v1798
    %2054 = vmatpush1.bf16.msra.mxu0 %v1797
    %2055 = vmatprep.subr.bf16.mxu0 %v1800
    %2056 = vmatpush1.bf16.msra.mxu0 %v1799
    %2057 = vmatprep.subr.bf16.mxu0 %v1802
    %2058 = vmatpush1.bf16.msra.mxu0 %v1801
    %2059 = vmatprep.subr.bf16.mxu0 %v1804
    %2060 = vmatpush1.bf16.msra.mxu0 %v1803
    %2061 = vmatprep.subr.bf16.mxu0 %v1806
    %2062 = vmatpush1.bf16.msra.mxu0 %v1805
    %2063 = vmatprep.subr.bf16.mxu0 %v1808
    %2064 = vmatpush1.bf16.msra.mxu0 %v1807
    %2065 = vmatprep.subr.bf16.mxu0 %v1810
    %2066 = vmatpush1.bf16.msra.mxu0 %v1809
    %2067 = vmatprep.subr.bf16.mxu0 %v1812
    %2068 = vmatpush1.bf16.msra.mxu0 %v1811
    %2069 = vmatprep.subr.bf16.mxu0 %v1814
    %2070 = vmatpush1.bf16.msra.mxu0 %v1813
    %2071 = vmatprep.subr.bf16.mxu0 %v1816
    %2072 = vmatpush1.bf16.msra.mxu0 %v1815
    %2073 = vmatprep.subr.bf16.mxu0 %v1818
    %2074 = vmatpush1.bf16.msra.mxu0 %v1817
    %2075 = vmatprep.subr.bf16.mxu0 %v1820
    %2076 = vmatpush1.bf16.msra.mxu0 %v1819
    %2077 = vmatprep.subr.bf16.mxu0 %v1822
    %2078 = vmatpush1.bf16.msra.mxu0 %v1821
    %2079 = vmatprep.subr.bf16.mxu0 %v1824
    %2080 = vmatpush1.bf16.msra.mxu0 %v1823
    %2081 = vmatprep.subr.bf16.mxu0 %v1826
    %2082 = vmatpush1.bf16.msra.mxu0 %v1825
    %2083 = vmatprep.mubr.bf16.mxu0 %v1264
    %2084 = vmatmul.mubr.bf16.gmra.mrb[0].mxu0 %v1263
    %v2085 = vpop.f32.mrb[0].mxu0
    %v2086 = vadd.f32 %v1404, %v2085
    %v2087 = vpop.f32.mrb[0].mxu0
    %v2088 = vadd.f32 %v1408, %v2087
    %v2089 = vpop.f32.mrb[0].mxu0
    %v2090 = vpop.f32.mrb[0].mxu0
    %2091 = vdwg.mxu0
    %2092 = vmatprep.subr.bf16.mxu0 %v1828
    %2093 = vmatpush1.bf16.msra.mxu0 %v1827
    %2094 = vmatprep.subr.bf16.mxu0 %v1830
    %2095 = vmatpush1.bf16.msra.mxu0 %v1829
    %2096 = vmatprep.subr.bf16.mxu0 %v1832
    %2097 = vmatpush1.bf16.msra.mxu0 %v1831
    %2098 = vmatprep.subr.bf16.mxu0 %v1834
    %2099 = vmatpush1.bf16.msra.mxu0 %v1833
    %2100 = vmatprep.subr.bf16.mxu0 %v1836
    %2101 = vmatpush1.bf16.msra.mxu0 %v1835
    %2102 = vmatprep.subr.bf16.mxu0 %v1838
    %2103 = vmatpush1.bf16.msra.mxu0 %v1837
    %2104 = vmatprep.subr.bf16.mxu0 %v1840
    %2105 = vmatpush1.bf16.msra.mxu0 %v1839
    %2106 = vmatprep.subr.bf16.mxu0 %v1842
    %2107 = vmatpush1.bf16.msra.mxu0 %v1841
    %2108 = vmatprep.subr.bf16.mxu0 %v1844
    %2109 = vmatpush1.bf16.msra.mxu0 %v1843
    %2110 = vmatprep.subr.bf16.mxu0 %v1846
    %2111 = vmatpush1.bf16.msra.mxu0 %v1845
    %2112 = vmatprep.subr.bf16.mxu0 %v1848
    %2113 = vmatpush1.bf16.msra.mxu0 %v1847
    %2114 = vmatprep.subr.bf16.mxu0 %v1850
    %2115 = vmatpush1.bf16.msra.mxu0 %v1849
    %2116 = vmatprep.subr.bf16.mxu0 %v1852
    %2117 = vmatpush1.bf16.msra.mxu0 %v1851
    %2118 = vmatprep.subr.bf16.mxu0 %v1854
    %2119 = vmatpush1.bf16.msra.mxu0 %v1853
    %2120 = vmatprep.subr.bf16.mxu0 %v1856
    %2121 = vmatpush1.bf16.msra.mxu0 %v1855
    %2122 = vmatprep.subr.bf16.mxu0 %v1858
    %2123 = vmatpush1.bf16.msra.mxu0 %v1857
    %2124 = vmatprep.mubr.bf16.mxu0 %v1266
    %2125 = vmatmul.mubr.bf16.gmra.mrb[0].mxu0 %v1265
    %v2126 = vpop.f32.mrb[0].mxu0
    %v2127 = vadd.f32 %v2086, %v2126
    %v2128 = vpop.f32.mrb[0].mxu0
    %v2129 = vadd.f32 %v2088, %v2128
    %v2130 = vpop.f32.mrb[0].mxu0
    %v2131 = vpop.f32.mrb[0].mxu0
    %2132 = vdwg.mxu0
    %2133 = vmatprep.subr.bf16.mxu0 %v1860
    %2134 = vmatpush1.bf16.msra.mxu0 %v1859
    %2135 = vmatprep.subr.bf16.mxu0 %v1862
    %2136 = vmatpush1.bf16.msra.mxu0 %v1861
    %2137 = vmatprep.subr.bf16.mxu0 %v1864
    %2138 = vmatpush1.bf16.msra.mxu0 %v1863
    %2139 = vmatprep.subr.bf16.mxu0 %v1866
    %2140 = vmatpush1.bf16.msra.mxu0 %v1865
    %2141 = vmatprep.subr.bf16.mxu0 %v1868
    %2142 = vmatpush1.bf16.msra.mxu0 %v1867
    %2143 = vmatprep.subr.bf16.mxu0 %v1870
    %2144 = vmatpush1.bf16.msra.mxu0 %v1869
    %2145 = vmatprep.subr.bf16.mxu0 %v1872
    %2146 = vmatpush1.bf16.msra.mxu0 %v1871
    %2147 = vmatprep.subr.bf16.mxu0 %v1874
    %2148 = vmatpush1.bf16.msra.mxu0 %v1873
    %2149 = vmatprep.subr.bf16.mxu0 %v1876
    %2150 = vmatpush1.bf16.msra.mxu0 %v1875
    %2151 = vmatprep.subr.bf16.mxu0 %v1878
    %2152 = vmatpush1.bf16.msra.mxu0 %v1877
    %2153 = vmatprep.subr.bf16.mxu0 %v1880
    %2154 = vmatpush1.bf16.msra.mxu0 %v1879
    %2155 = vmatprep.subr.bf16.mxu0 %v1882
    %2156 = vmatpush1.bf16.msra.mxu0 %v1881
    %2157 = vmatprep.subr.bf16.mxu0 %v1884
    %2158 = vmatpush1.bf16.msra.mxu0 %v1883
    %2159 = vmatprep.subr.bf16.mxu0 %v1886
    %2160 = vmatpush1.bf16.msra.mxu0 %v1885
    %2161 = vmatprep.subr.bf16.mxu0 %v1888
    %2162 = vmatpush1.bf16.msra.mxu0 %v1887
    %2163 = vmatprep.subr.bf16.mxu0 %v1890
    %2164 = vmatpush1.bf16.msra.mxu0 %v1889
    %2165 = vmatprep.mubr.bf16.mxu0 %v1268
    %2166 = vmatmul.mubr.bf16.gmra.mrb[0].mxu0 %v1267
    %v2167 = vpop.f32.mrb[0].mxu0
    %v2168 = vadd.f32 %v2127, %v2167
    %v2169 = vpop.f32.mrb[0].mxu0
    %v2170 = vadd.f32 %v2129, %v2169
    %v2171 = vpop.f32.mrb[0].mxu0
    %v2172 = vpop.f32.mrb[0].mxu0
    %2173 = vdwg.mxu0
    %2174 = vmatprep.subr.bf16.mxu0 %v1892
    %2175 = vmatpush1.bf16.msra.mxu0 %v1891
    %2176 = vmatprep.subr.bf16.mxu0 %v1894
    %2177 = vmatpush1.bf16.msra.mxu0 %v1893
    %2178 = vmatprep.subr.bf16.mxu0 %v1896
    %2179 = vmatpush1.bf16.msra.mxu0 %v1895
    %2180 = vmatprep.subr.bf16.mxu0 %v1898
    %2181 = vmatpush1.bf16.msra.mxu0 %v1897
    %2182 = vmatprep.subr.bf16.mxu0 %v1900
    %2183 = vmatpush1.bf16.msra.mxu0 %v1899
    %2184 = vmatprep.subr.bf16.mxu0 %v1902
    %2185 = vmatpush1.bf16.msra.mxu0 %v1901
    %2186 = vmatprep.subr.bf16.mxu0 %v1904
    %2187 = vmatpush1.bf16.msra.mxu0 %v1903
    %2188 = vmatprep.subr.bf16.mxu0 %v1906
    %2189 = vmatpush1.bf16.msra.mxu0 %v1905
    %2190 = vmatprep.subr.bf16.mxu0 %v1908
    %2191 = vmatpush1.bf16.msra.mxu0 %v1907
    %2192 = vmatprep.subr.bf16.mxu0 %v1910
    %2193 = vmatpush1.bf16.msra.mxu0 %v1909
    %2194 = vmatprep.subr.bf16.mxu0 %v1912
    %2195 = vmatpush1.bf16.msra.mxu0 %v1911
    %2196 = vmatprep.subr.bf16.mxu0 %v1914
    %2197 = vmatpush1.bf16.msra.mxu0 %v1913
    %2198 = vmatprep.subr.bf16.mxu0 %v1916
    %2199 = vmatpush1.bf16.msra.mxu0 %v1915
    %2200 = vmatprep.subr.bf16.mxu0 %v1918
    %2201 = vmatpush1.bf16.msra.mxu0 %v1917
    %2202 = vmatprep.subr.bf16.mxu0 %v1920
    %2203 = vmatpush1.bf16.msra.mxu0 %v1919
    %2204 = vmatprep.subr.bf16.mxu0 %v1922
    %2205 = vmatpush1.bf16.msra.mxu0 %v1921
    %2206 = vmatprep.mubr.bf16.mxu0 %v1270
    %2207 = vmatmul.mubr.bf16.gmra.mrb[0].mxu0 %v1269
    %v2208 = vpop.f32.mrb[0].mxu0
    %v2209 = vadd.f32 %v2168, %v2208
    %v2210 = vpop.f32.mrb[0].mxu0
    %v2211 = vadd.f32 %v2170, %v2210
    %v2212 = vpop.f32.mrb[0].mxu0
    %v2213 = vpop.f32.mrb[0].mxu0
    %2214 = vdwg.mxu0
    %v2215 = vmin.f32 %v2209, 0.0
    %v2216 = vmin.f32 %v2211, 0.0
    %v2217 = vmul.f32 %v2215, 1.442695
    %v2218 = vpow.pop %v2217
    %v2219 = vmul.f32 %v2216, 1.442695
    %v2220 = vpow.pop %v2219
    %v2221 = vmul.f32 %v2218, 1.6732632
    %v2222 = vmul.f32 %v2220, 1.6732632
    %v2223 = vsub.f32 %v2221, 1.6732632
    %v2224 = vsub.f32 %v2222, 1.6732632
    %vm2225 = vcmp.ge.f32.partialorder %v2209, 0.0
    %vm2226 = vcmp.ge.f32.partialorder %v2211, 0.0
    %v2227 = vsel %vm2225, %v2209, %v2223
    %v2228 = vsel %vm2226, %v2211, %v2224
    %v2229 = vmul.f32 %v2227, 1.050701
    %v2230 = vmul.f32 %v2228, 1.050701
    %v2231 = vpack.c.bf16 %v2229, %v2229
    %v2232 = vpack.c.bf16 %v2230, %v2230
    %v2233 = vld [vmem:[%s9] sm:$0xff]
    %v2234 = vld [vmem:[%s9 + $0x8] sm:$0xff]
    %v2235 = vld [vmem:[%s9 + $0x10] sm:$0xff]
    %v2236 = vld [vmem:[%s9 + $0x18] sm:$0xff]
    %v2237 = vld [vmem:[%s9 + $0x20] sm:$0xff]
    %v2238 = vld [vmem:[%s9 + $0x28] sm:$0xff]
    %v2239 = vld [vmem:[%s9 + $0x30] sm:$0xff]
    %v2240 = vld [vmem:[%s9 + $0x38] sm:$0xff]
    %v2241 = vld [vmem:[%s9 + $0x40] sm:$0xff]
    %v2242 = vld [vmem:[%s9 + $0x48] sm:$0xff]
    %v2243 = vld [vmem:[%s9 + $0x50] sm:$0xff]
    %v2244 = vld [vmem:[%s9 + $0x58] sm:$0xff]
    %v2245 = vld [vmem:[%s9 + $0x60] sm:$0xff]
    %v2246 = vld [vmem:[%s9 + $0x68] sm:$0xff]
    %v2247 = vld [vmem:[%s9 + $0x70] sm:$0xff]
    %v2248 = vld [vmem:[%s9 + $0x78] sm:$0xff]
    %v2249 = vld [vmem:[%s9 + $0x80] sm:$0xff]
    %v2250 = vld [vmem:[%s9 + $0x88] sm:$0xff]
    %v2251 = vld [vmem:[%s9 + $0x90] sm:$0xff]
    %v2252 = vld [vmem:[%s9 + $0x98] sm:$0xff]
    %v2253 = vld [vmem:[%s9 + $0xa0] sm:$0xff]
    %v2254 = vld [vmem:[%s9 + $0xa8] sm:$0xff]
    %v2255 = vld [vmem:[%s9 + $0xb0] sm:$0xff]
    %v2256 = vld [vmem:[%s9 + $0xb8] sm:$0xff]
    %v2257 = vld [vmem:[%s10] sm:$0x3]
    %v2259 = vlaneseq
    %v2260 = vshrl.u32 %v2259, 7
    %v2261 = vsub.s32 0, %v2260
    %v2262 = vrot.slane %v2257, %v2261
    %v2263 = vlaneseq
    %v2264 = vshrl.u32 %v2263, 7
    %v2265 = vsub.s32 1, %v2264
    %v2266 = vrot.slane %v2257, %v2265
    %v2293 = vunpack.c.l.b16 %v2233
    %v2294 = vunpack.c.h.b16 %v2233
    %v2295 = vunpack.c.l.b16 %v2234
    %v2296 = vunpack.c.h.b16 %v2234
    %v2297 = vunpack.c.l.b16 %v2235
    %v2298 = vunpack.c.h.b16 %v2235
    %v2299 = vunpack.c.l.b16 %v2236
    %v2300 = vunpack.c.h.b16 %v2236
    %v2301 = vunpack.c.l.b16 %v2237
    %v2302 = vunpack.c.h.b16 %v2237
    %v2303 = vunpack.c.l.b16 %v2238
    %v2304 = vunpack.c.h.b16 %v2238
    %v2305 = vunpack.c.l.b16 %v2239
    %v2306 = vunpack.c.h.b16 %v2239
    %v2307 = vunpack.c.l.b16 %v2240
    %v2308 = vunpack.c.h.b16 %v2240
    %v2309 = vunpack.c.l.b16 %v2241
    %v2310 = vunpack.c.h.b16 %v2241
    %v2311 = vunpack.c.l.b16 %v2242
    %v2312 = vunpack.c.h.b16 %v2242
    %v2313 = vunpack.c.l.b16 %v2243
    %v2314 = vunpack.c.h.b16 %v2243
    %v2315 = vunpack.c.l.b16 %v2244
    %v2316 = vunpack.c.h.b16 %v2244
    %v2317 = vunpack.c.l.b16 %v2245
    %v2318 = vunpack.c.h.b16 %v2245
    %v2319 = vunpack.c.l.b16 %v2246
    %v2320 = vunpack.c.h.b16 %v2246
    %v2321 = vunpack.c.l.b16 %v2247
    %v2322 = vunpack.c.h.b16 %v2247
    %v2323 = vunpack.c.l.b16 %v2248
    %v2324 = vunpack.c.h.b16 %v2248
    %v2325 = vunpack.c.l.b16 %v2249
    %v2326 = vunpack.c.h.b16 %v2249
    %v2327 = vunpack.c.l.b16 %v2250
    %v2328 = vunpack.c.h.b16 %v2250
    %v2329 = vunpack.c.l.b16 %v2251
    %v2330 = vunpack.c.h.b16 %v2251
    %v2331 = vunpack.c.l.b16 %v2252
    %v2332 = vunpack.c.h.b16 %v2252
    %v2333 = vunpack.c.l.b16 %v2253
    %v2334 = vunpack.c.h.b16 %v2253
    %v2335 = vunpack.c.l.b16 %v2254
    %v2336 = vunpack.c.h.b16 %v2254
    %v2337 = vunpack.c.l.b16 %v2255
    %v2338 = vunpack.c.h.b16 %v2255
    %v2339 = vunpack.c.l.b16 %v2256
    %v2340 = vunpack.c.h.b16 %v2256
    %v2341 = vpack.c.b16 %v2295, %v2293
    %v2342 = vpack.c.b16 %v2296, %v2294
    %v2343 = vpack.c.b16 %v2299, %v2297
    %v2344 = vpack.c.b16 %v2300, %v2298
    %v2345 = vpack.c.b16 %v2303, %v2301
    %v2346 = vpack.c.b16 %v2304, %v2302
    %v2347 = vpack.c.b16 %v2307, %v2305
    %v2348 = vpack.c.b16 %v2308, %v2306
    %v2349 = vpack.c.b16 %v2311, %v2309
    %v2350 = vpack.c.b16 %v2312, %v2310
    %v2351 = vpack.c.b16 %v2315, %v2313
    %v2352 = vpack.c.b16 %v2316, %v2314
    %v2353 = vpack.c.b16 %v2319, %v2317
    %v2354 = vpack.c.b16 %v2320, %v2318
    %v2355 = vpack.c.b16 %v2323, %v2321
    %v2356 = vpack.c.b16 %v2324, %v2322
    %v2357 = vpack.c.b16 %v2327, %v2325
    %v2358 = vpack.c.b16 %v2328, %v2326
    %v2359 = vpack.c.b16 %v2331, %v2329
    %v2360 = vpack.c.b16 %v2332, %v2330
    %v2361 = vpack.c.b16 %v2335, %v2333
    %v2362 = vpack.c.b16 %v2336, %v2334
    %v2363 = vpack.c.b16 %v2339, %v2337
    %v2364 = vpack.c.b16 %v2340, %v2338
    %v2390 = vsel %vm1095, %v2232, 0
    %2392 = vmatprep.subr.bf16.mxu0 %v2342
    %2393 = vmatpush1.bf16.msra.mxu0 %v2341
    %2394 = vmatprep.subr.bf16.mxu0 %v2344
    %2395 = vmatpush1.bf16.msra.mxu0 %v2343
    %2396 = vmatprep.subr.bf16.mxu0 %v2346
    %2397 = vmatpush1.bf16.msra.mxu0 %v2345
    %2398 = vmatprep.subr.bf16.mxu0 %v2348
    %2399 = vmatpush1.bf16.msra.mxu0 %v2347
    %2400 = vmatprep.subr.bf16.mxu0 %v2350
    %2401 = vmatpush1.bf16.msra.mxu0 %v2349
    %2402 = vmatprep.subr.bf16.mxu0 %v2352
    %2403 = vmatpush1.bf16.msra.mxu0 %v2351
    %2404 = vmatprep.subr.bf16.mxu0 %v2354
    %2405 = vmatpush1.bf16.msra.mxu0 %v2353
    %2406 = vmatprep.subr.bf16.mxu0 %v2356
    %2407 = vmatpush1.bf16.msra.mxu0 %v2355
    %2408 = vmatprep.subr.bf16.mxu0 %v2358
    %2409 = vmatpush1.bf16.msra.mxu0 %v2357
    %2410 = vmatprep.subr.bf16.mxu0 %v2360
    %2411 = vmatpush1.bf16.msra.mxu0 %v2359
    %2412 = vmatprep.subr.bf16.mxu0 %v2362
    %2413 = vmatpush1.bf16.msra.mxu0 %v2361
    %2414 = vmatprep.subr.bf16.mxu0 %v2364
    %2415 = vmatpush1.bf16.msra.mxu0 %v2363
    %2416 = vmatprep.subr.bf16.mxu0 0
    %2417 = vmatpush1.bf16.msra.mxu0 0
    %2418 = vmatprep.subr.bf16.mxu0 0
    %2419 = vmatpush1.bf16.msra.mxu0 0
    %2420 = vmatprep.subr.bf16.mxu0 0
    %2421 = vmatpush1.bf16.msra.mxu0 0
    %2422 = vmatprep.subr.bf16.mxu0 0
    %2423 = vmatpush1.bf16.msra.mxu0 0
    %2424 = vmatprep.mubr.bf16.mxu0 %v2390
    %2425 = vmatmul.mubr.bf16.gmra.mrb[0].mxu0 %v2231
    %v2426 = vpop.f32.mrb[0].mxu0
    %v2427 = vadd.f32 %v2262, %v2426
    %v2428 = vpop.f32.mrb[0].mxu0
    %v2429 = vadd.f32 %v2266, %v2428
    %v2430 = vpop.f32.mrb[0].mxu0
    %v2431 = vpop.f32.mrb[0].mxu0
    %2432 = vdwg.mxu0
    %v2433 = vmin.f32 %v2427, 0.0
    %v2434 = vmin.f32 %v2429, 0.0
    %v2435 = vmul.f32 %v2433, 1.442695
    %v2436 = vpow.pop %v2435
    %v2437 = vmul.f32 %v2434, 1.442695
    %v2438 = vpow.pop %v2437
    %v2439 = vmul.f32 %v2436, 1.6732632
    %v2440 = vmul.f32 %v2438, 1.6732632
    %v2441 = vsub.f32 %v2439, 1.6732632
    %v2442 = vsub.f32 %v2440, 1.6732632
    %vm2443 = vcmp.ge.f32.partialorder %v2427, 0.0
    %vm2444 = vcmp.ge.f32.partialorder %v2429, 0.0
    %v2445 = vsel %vm2443, %v2427, %v2441
    %v2446 = vsel %vm2444, %v2429, %v2442
    %v2447 = vmul.f32 %v2445, 1.050701
    %v2448 = vmul.f32 %v2446, 1.050701
    %v2449 = vpack.c.bf16 %v2447, %v2447
    %v2450 = vpack.c.bf16 %v2448, %v2448
    %v2451 = vld [vmem:[%s11] sm:$0xf]
    %v2452 = vld [vmem:[%s11 + $0x4] sm:$0xf]
    %v2453 = vld [vmem:[%s11 + $0x8] sm:$0xf]
    %v2454 = vld [vmem:[%s11 + $0xc] sm:$0xf]
    %v2455 = vld [vmem:[%s11 + $0x10] sm:$0xf]
    %v2456 = vld [vmem:[%s11 + $0x14] sm:$0xf]
    %v2457 = vld [vmem:[%s11 + $0x18] sm:$0xf]
    %v2458 = vld [vmem:[%s11 + $0x1c] sm:$0xf]
    %v2459 = vld [vmem:[%s11 + $0x20] sm:$0xf]
    %v2460 = vld [vmem:[%s11 + $0x24] sm:$0xf]
    %v2461 = vld [vmem:[%s11 + $0x28] sm:$0xf]
    %v2462 = vld [vmem:[%s11 + $0x2c] sm:$0xf]
    %v2463 = vld [vmem:[%s11 + $0x30] sm:$0xf]
    %v2464 = vld [vmem:[%s11 + $0x34] sm:$0xf]
    %v2465 = vld [vmem:[%s11 + $0x38] sm:$0xf]
    %v2466 = vld [vmem:[%s11 + $0x3c] sm:$0xf]
    %v2467 = vld [vmem:[%s11 + $0x40] sm:$0xf]
    %v2468 = vld [vmem:[%s11 + $0x44] sm:$0xf]
    %v2469 = vld [vmem:[%s11 + $0x48] sm:$0xf]
    %v2470 = vld [vmem:[%s11 + $0x4c] sm:$0xf]
    %v2471 = vld [vmem:[%s11 + $0x50] sm:$0xf]
    %v2472 = vld [vmem:[%s11 + $0x54] sm:$0xf]
    %v2473 = vld [vmem:[%s11 + $0x58] sm:$0xf]
    %v2474 = vld [vmem:[%s11 + $0x5c] sm:$0xf]
    %v2475 = vld [vmem:[%s11 + $0x60] sm:$0xf]
    %v2476 = vld [vmem:[%s11 + $0x64] sm:$0xf]
    %v2477 = vld [vmem:[%s11 + $0x68] sm:$0xf]
    %v2478 = vld [vmem:[%s11 + $0x6c] sm:$0xf]
    %v2479 = vld [vmem:[%s11 + $0x70] sm:$0xf]
    %v2480 = vld [vmem:[%s11 + $0x74] sm:$0xf]
    %v2481 = vld [vmem:[%s11 + $0x78] sm:$0xf]
    %v2482 = vld [vmem:[%s11 + $0x7c] sm:$0xf]
    %v2483 = vld [vmem:[%s12] sm:$0x1]
    %v2485 = vlaneseq
    %v2486 = vshrl.u32 %v2485, 7
    %v2487 = vsub.s32 0, %v2486
    %v2488 = vrot.slane %v2483, %v2487
    %v2522 = vunpack.c.l.b16 %v2451
    %v2523 = vunpack.c.l.b16 %v2452
    %v2524 = vunpack.c.l.b16 %v2453
    %v2525 = vunpack.c.l.b16 %v2454
    %v2526 = vunpack.c.l.b16 %v2455
    %v2527 = vunpack.c.l.b16 %v2456
    %v2528 = vunpack.c.l.b16 %v2457
    %v2529 = vunpack.c.l.b16 %v2458
    %v2530 = vunpack.c.l.b16 %v2459
    %v2531 = vunpack.c.l.b16 %v2460
    %v2532 = vunpack.c.l.b16 %v2461
    %v2533 = vunpack.c.l.b16 %v2462
    %v2534 = vunpack.c.l.b16 %v2463
    %v2535 = vunpack.c.l.b16 %v2464
    %v2536 = vunpack.c.l.b16 %v2465
    %v2537 = vunpack.c.l.b16 %v2466
    %v2538 = vunpack.c.l.b16 %v2467
    %v2539 = vunpack.c.l.b16 %v2468
    %v2540 = vunpack.c.l.b16 %v2469
    %v2541 = vunpack.c.l.b16 %v2470
    %v2542 = vunpack.c.l.b16 %v2471
    %v2543 = vunpack.c.l.b16 %v2472
    %v2544 = vunpack.c.l.b16 %v2473
    %v2545 = vunpack.c.l.b16 %v2474
    %v2546 = vunpack.c.l.b16 %v2475
    %v2547 = vunpack.c.l.b16 %v2476
    %v2548 = vunpack.c.l.b16 %v2477
    %v2549 = vunpack.c.l.b16 %v2478
    %v2550 = vunpack.c.l.b16 %v2479
    %v2551 = vunpack.c.l.b16 %v2480
    %v2552 = vunpack.c.l.b16 %v2481
    %v2553 = vunpack.c.l.b16 %v2482
    %v2554 = vpack.c.b16 %v2523, %v2522
    %v2555 = vpack.c.b16 %v2525, %v2524
    %v2556 = vpack.c.b16 %v2527, %v2526
    %v2557 = vpack.c.b16 %v2529, %v2528
    %v2558 = vpack.c.b16 %v2531, %v2530
    %v2559 = vpack.c.b16 %v2533, %v2532
    %v2560 = vpack.c.b16 %v2535, %v2534
    %v2561 = vpack.c.b16 %v2537, %v2536
    %v2562 = vpack.c.b16 %v2539, %v2538
    %v2563 = vpack.c.b16 %v2541, %v2540
    %v2564 = vpack.c.b16 %v2543, %v2542
    %v2565 = vpack.c.b16 %v2545, %v2544
    %v2566 = vpack.c.b16 %v2547, %v2546
    %v2567 = vpack.c.b16 %v2549, %v2548
    %v2568 = vpack.c.b16 %v2551, %v2550
    %v2569 = vpack.c.b16 %v2553, %v2552
    %2586 = vmatprep.subr.bf16.mxu0 0
    %2587 = vmatpush1.bf16.msra.mxu0 %v2554
    %2588 = vmatprep.subr.bf16.mxu0 0
    %2589 = vmatpush1.bf16.msra.mxu0 %v2555
    %2590 = vmatprep.subr.bf16.mxu0 0
    %2591 = vmatpush1.bf16.msra.mxu0 %v2556
    %2592 = vmatprep.subr.bf16.mxu0 0
    %2593 = vmatpush1.bf16.msra.mxu0 %v2557
    %2594 = vmatprep.subr.bf16.mxu0 0
    %2595 = vmatpush1.bf16.msra.mxu0 %v2558
    %2596 = vmatprep.subr.bf16.mxu0 0
    %2597 = vmatpush1.bf16.msra.mxu0 %v2559
    %2598 = vmatprep.subr.bf16.mxu0 0
    %2599 = vmatpush1.bf16.msra.mxu0 %v2560
    %2600 = vmatprep.subr.bf16.mxu0 0
    %2601 = vmatpush1.bf16.msra.mxu0 %v2561
    %2602 = vmatprep.subr.bf16.mxu0 0
    %2603 = vmatpush1.bf16.msra.mxu0 %v2562
    %2604 = vmatprep.subr.bf16.mxu0 0
    %2605 = vmatpush1.bf16.msra.mxu0 %v2563
    %2606 = vmatprep.subr.bf16.mxu0 0
    %2607 = vmatpush1.bf16.msra.mxu0 %v2564
    %2608 = vmatprep.subr.bf16.mxu0 0
    %2609 = vmatpush1.bf16.msra.mxu0 %v2565
    %2610 = vmatprep.subr.bf16.mxu0 0
    %2611 = vmatpush1.bf16.msra.mxu0 %v2566
    %2612 = vmatprep.subr.bf16.mxu0 0
    %2613 = vmatpush1.bf16.msra.mxu0 %v2567
    %2614 = vmatprep.subr.bf16.mxu0 0
    %2615 = vmatpush1.bf16.msra.mxu0 %v2568
    %2616 = vmatprep.subr.bf16.mxu0 0
    %2617 = vmatpush1.bf16.msra.mxu0 %v2569
    %2618 = vmatprep.mubr.bf16.mxu0 %v2450
    %2619 = vmatmul.mubr.bf16.gmra.mrb[0].mxu0 %v2449
    %v2620 = vpop.f32.mrb[0].mxu0
    %v2621 = vadd.f32 %v2488, %v2620
    %v2622 = vpop.f32.mrb[0].mxu0
    %v2623 = vpop.f32.mrb[0].mxu0
    %v2624 = vpop.f32.mrb[0].mxu0
    %2625 = vdwg.mxu0
    %v2626 = vmin.f32 %v2621, 0.0
    %v2627 = vmul.f32 %v2626, 1.442695
    %v2628 = vpow.pop %v2627
    %v2629 = vmul.f32 %v2628, 1.6732632
    %v2630 = vsub.f32 %v2629, 1.6732632
    %vm2631 = vcmp.ge.f32.partialorder %v2621, 0.0
    %v2632 = vsel %vm2631, %v2621, %v2630
    %v2633 = vmul.f32 %v2632, 1.050701
    %2634 = vst [vmem:[#allocation2] sm:$0xff] %v2633
    // Predicated region
    $region54: #{autoencoder_forward.1} parent=1 // pred_check
      _
    $region55: #{autoencoder_forward.1} parent=1 // pred_check_branch
      %2636 = sbr.rel (0) target = $region57
    $region56: #{autoencoder_forward.1} parent=1 // pred_region
      // Predicated region
      $region58: #{autoencoder_forward.1} parent=56 // pred_check
        _
      $region59: #{autoencoder_forward.1} parent=56 // pred_check_branch
        %2638 = sbr.rel (0) target = $region61
      $region60: #{autoencoder_forward.1} parent=56 // pred_region
        // Predicated region
        $region62: #{autoencoder_forward.1} parent=60 // pred_check
          _
        $region63: #{autoencoder_forward.1} parent=60 // pred_check_branch
          %2640 = sbr.rel target = $region65
        $region64: #{autoencoder_forward.1} parent=60 // pred_region
          // Predicated region
          $region77: #{autoencoder_forward.1} parent=64 // pred_check
            _
          $region78: #{autoencoder_forward.1} parent=64 // pred_check_branch
            %2655 = sbr.rel (0) target = $region80
          $region79: #{autoencoder_forward.1} parent=64 // pred_region
            loop: start=0, step=1, limit=1
            $region81: #{autoencoder_forward.1} parent=79 // loop_pre_header
              _
            $region82: #{autoencoder_forward.1} parent=79 // loop_header
              %s2658 = sphi 0, %s2662
              %p2659 = scmp.ge.s32.totalorder %s2658, 1
              %s2663 = sphi [#allocation2], [#allocation2]
              %s2664 = sphi %s13, %s13
            $region83: #{autoencoder_forward.1} parent=79 // loop_header_branch
              %2661 = sbr.rel (%p2659) target = $region87
            $region84: #{autoencoder_forward.1} parent=79 // loop_body
              %v2665 = vld [vmem:[%s2663] sm:$0x1]
              %2666 = vst [vmem:[%s2664] sm:$0x1] %v2665
            $region85: #{autoencoder_forward.1} parent=79 // loop_footer
              %s2662 = sadd.s32 1, %s2658
            $region86: #{autoencoder_forward.1} parent=79 // loop_footer_branch
              %2657 = sbr.rel target = $region82
            $region87: #{autoencoder_forward.1} parent=79 // loop_exit
              _
          $region80: #{autoencoder_forward.1} parent=64 // pred_fallthru
            _
        $region65: #{autoencoder_forward.1} parent=60 // pred_fallthru
          _
        // Predicated region
        $region66: #{autoencoder_forward.1} parent=60 // pred_check
          _
        $region67: #{autoencoder_forward.1} parent=60 // pred_check_branch
          %2642 = sbr.rel (0) target = $region69
        $region68: #{autoencoder_forward.1} parent=60 // pred_region
          loop: start=0, step=1, limit=1
          $region70: #{autoencoder_forward.1} parent=68 // loop_pre_header
            _
          $region71: #{autoencoder_forward.1} parent=68 // loop_header
            %s2645 = sphi 0, %s2649
            %p2646 = scmp.ge.s32.totalorder %s2645, 1
            %s2650 = sphi [#allocation2], [#allocation2]
            %s2651 = sphi %s13, %s13
          $region72: #{autoencoder_forward.1} parent=68 // loop_header_branch
            %2648 = sbr.rel (%p2646) target = $region76
          $region73: #{autoencoder_forward.1} parent=68 // loop_body
            %v2652 = vld [vmem:[%s2650] sm:$0x1]
            %2653 = vst [vmem:[%s2651] sm:$0x1] %v2652
          $region74: #{autoencoder_forward.1} parent=68 // loop_footer
            %s2649 = sadd.s32 1, %s2645
          $region75: #{autoencoder_forward.1} parent=68 // loop_footer_branch
            %2644 = sbr.rel target = $region71
          $region76: #{autoencoder_forward.1} parent=68 // loop_exit
            _
        $region69: #{autoencoder_forward.1} parent=60 // pred_fallthru
          _
      $region61: #{autoencoder_forward.1} parent=56 // pred_fallthru
        _
      %2667 = vnop
    $region57: #{autoencoder_forward.1} parent=1 // pred_fallthru
      _
    // Predicated region
    $region88: #{autoencoder_forward.1} parent=1 // pred_check
      _
    $region89: #{autoencoder_forward.1} parent=1 // pred_check_branch
      %2669 = sbr.rel (0) target = $region91
    $region90: #{autoencoder_forward.1} parent=1 // pred_region
      _
    $region91: #{autoencoder_forward.1} parent=1 // pred_fallthru
      _

</llo_original>
